<compile_context>
chip_gen: v6e
topology: v6e:2x2x1
jax: 0.10.0
libtpu: 0.0.40
codegen_flags: <defaults>
</compile_context>

<pallas_src>
import functools

import jax
import jax.numpy as jnp
from jax import lax
from jax.experimental import pallas as pl
from jax.experimental.pallas import tpu as pltpu

_LANE = 128
_SUBLANE = 8
_CHUNK = _LANE * _SUBLANE          # 1024 samples per inner chunk -> (8, 128) slabs


def _mlp_kernel(x_ref, w1_ref, b1_ref, w2_ref, b2_ref, w3_ref, b3_ref, o_ref,
                *, n_chunks):
    """One batch tile. x_ref: (2, tb//128, 128) VMEM; weights flat f32 in SMEM;
    o_ref: (tb//128, 128) VMEM. Every sample is one (sublane, lane) slot."""

    def chunk_body(c, carry):
        s0 = pl.multiple_of(c * _SUBLANE, _SUBLANE)
        x0 = x_ref[0, pl.ds(s0, _SUBLANE), :]            # (8, 128) dense slab
        x1 = x_ref[1, pl.ds(s0, _SUBLANE), :]            # (8, 128)

        # Layer 1: h1[j] = relu(w1[j,0]*x0 + w1[j,1]*x1 + b1[j])   -> 16 slabs
        h1 = []
        for j in range(16):
            a = w1_ref[2 * j] * x0 + w1_ref[2 * j + 1] * x1 + b1_ref[j]
            h1.append(jnp.maximum(a, 0.0))

        # Layer 2: h2[j] = relu(sum_k w2[j,k]*h1[k] + b2[j])        -> 8 slabs
        h2 = []
        for j in range(8):
            acc = w2_ref[16 * j] * h1[0]
            for k in range(1, 16):
                acc = acc + w2_ref[16 * j + k] * h1[k]
            h2.append(jnp.maximum(acc + b2_ref[j], 0.0))

        # Layer 3: y = sum_k w3[k]*h2[k] + b3                        -> 1 slab
        y = w3_ref[0] * h2[0]
        for k in range(1, 8):
            y = y + w3_ref[k] * h2[k]
        y = y + b3_ref[0]

        o_ref[pl.ds(s0, _SUBLANE), :] = y.astype(o_ref.dtype)       # unmasked (8,128) store
        return carry

    lax.fori_loop(0, n_chunks, chunk_body, 0, unroll=True)


def _round_up(a, m):
    return ((a + m - 1) // m) * m


@functools.partial(jax.jit, static_argnames=("tile_b",))
def energy_predictor_forward(x, params, *, tile_b=8192):
    """x: (B, 2) float32. params: PyTorch-layout weights
    w1 (16,2), b1 (16,), w2 (8,16), b2 (8,), w3 (1,8), b3 (1,).
    Returns (B, 1) float32 = layer3(relu(layer2(relu(layer1(x)))))."""
    assert tile_b % _CHUNK == 0, "tile_b must be a multiple of 1024 (8 sublanes x 128 lanes)"
    B = x.shape[0]

    # Flatten weights row-major so the kernel reads them as scalars from SMEM.
    w1 = params["w1"].reshape(-1).astype(jnp.float32)    # (32,)  index 2j + k
    b1 = params["b1"].reshape(-1).astype(jnp.float32)    # (16,)
    w2 = params["w2"].reshape(-1).astype(jnp.float32)    # (128,) index 16j + k
    b2 = params["b2"].reshape(-1).astype(jnp.float32)    # (8,)
    w3 = params["w3"].reshape(-1).astype(jnp.float32)    # (8,)
    b3 = params["b3"].reshape(-1).astype(jnp.float32)    # (1,)

    # Batch tiling: pad to a chunk multiple; big tiles amortize grid-step overhead;
    # for medium batches cap the tile at half the padded batch so v7x's 2 TCs both work.
    bp = _round_up(max(B, 1), _CHUNK)
    tb = min(tile_b, bp)
    if bp // tb < 2 and bp >= 2 * _CHUNK:
        tb = _round_up(bp // 2, _CHUNK)
    bp = _round_up(bp, tb)
    grid = (bp // tb,)
    sub_tile = tb // _LANE          # sublanes per tile (multiple of 8)
    n_chunks = tb // _CHUNK

    # Layout plumbing (inside this jit): batch dense on sublanes + lanes, zero-padded tail.
    xt = jnp.zeros((2, bp), jnp.float32).at[:, :B].set(x.T.astype(jnp.float32))
    xt = xt.reshape(2, bp // _LANE, _LANE)

    smem = pl.BlockSpec(memory_space=pltpu.MemorySpace.SMEM)
    n_param_bytes = 4 * (w1.size + b1.size + w2.size + b2.size + w3.size + b3.size)

    out = pl.pallas_call(
        functools.partial(_mlp_kernel, n_chunks=n_chunks),
        out_shape=jax.ShapeDtypeStruct((bp // _LANE, _LANE), jnp.float32),
        grid=grid,
        in_specs=[
            pl.BlockSpec((2, sub_tile, _LANE), lambda i: (0, i, 0)),   # x tile (VMEM, pipelined)
            smem, smem, smem, smem, smem, smem,                        # weights/biases (SMEM)
        ],
        out_specs=pl.BlockSpec((sub_tile, _LANE), lambda i: (i, 0)),   # dense (8,128) output tile
        compiler_params=pltpu.CompilerParams(
            dimension_semantics=("parallel",),                         # shard batch tiles (v7x)
        ),
        cost_estimate=pl.CostEstimate(
            flops=336 * bp,                          # 2*(2*16 + 16*8 + 8*1) per sample
            transcendentals=0,
            bytes_accessed=12 * bp + n_param_bytes,  # 8 B in + 4 B out per sample
        ),
    )(xt, w1, b1, w2, b2, w3, b3)

    return out.reshape(bp)[:B].reshape(B, 1)


def init_params(key):
    """Deterministic synthetic parameters, stored (out_features, in_features) like PyTorch."""
    k1, k2, k3, k4, k5, k6 = jax.random.split(key, 6)
    return {
        "w1": jax.random.normal(k1, (16, 2), jnp.float32) * 0.5,
        "b1": jax.random.normal(k2, (16,), jnp.float32) * 0.1,
        "w2": jax.random.normal(k3, (8, 16), jnp.float32) * 0.5,
        "b2": jax.random.normal(k4, (8,), jnp.float32) * 0.1,
        "w3": jax.random.normal(k5, (1, 8), jnp.float32) * 0.5,
        "b3": jax.random.normal(k6, (1,), jnp.float32) * 0.1,
    }


def _reference_forward(x, p):
    h1 = jnp.maximum(x @ p["w1"].T + p["b1"], 0.0)
    h2 = jnp.maximum(h1 @ p["w2"].T + p["b2"], 0.0)
    return h2 @ p["w3"].T + p["b3"]


if __name__ == "__main__":
    key = jax.random.PRNGKey(0)
    k_params, k_x1, k_x2, k_x3 = jax.random.split(key, 4)
    params = init_params(k_params)

    # Tiny batch (single tile, single inner chunk).
    x_small = jax.random.normal(k_x1, (8, 2), jnp.float32)
    out_small = jax.block_until_ready(energy_predictor_forward(x_small, params))
    ref_small = _reference_forward(x_small, params)
    assert out_small.shape == (8, 1), out_small.shape
    assert jnp.allclose(out_small, ref_small, atol=1e-5, rtol=1e-5), "mismatch vs reference (B=8)"

    # Ragged batch (exercises lane/sublane zero-padding of the tail).
    x_mid = jax.random.normal(k_x2, (300, 2), jnp.float32)
    out_mid = jax.block_until_ready(energy_predictor_forward(x_mid, params))
    ref_mid = _reference_forward(x_mid, params)
    assert out_mid.shape == (300, 1), out_mid.shape
    assert jnp.allclose(out_mid, ref_mid, atol=1e-5, rtol=1e-5), "mismatch vs reference (B=300)"

    # Multi-tile batch (grid > 1: exercises the v7x two-tile split and the inner chunk loop).
    x_big = jax.random.normal(k_x3, (2500, 2), jnp.float32)
    out_big = jax.block_until_ready(energy_predictor_forward(x_big, params))
    ref_big = _reference_forward(x_big, params)
    assert out_big.shape == (2500, 1), out_big.shape
    assert jnp.allclose(out_big, ref_big, atol=1e-5, rtol=1e-5), "mismatch vs reference (B=2500)"

    print("KERNEL_OK")
</pallas_src>

<mosaic_0001>
module attributes {stable_mosaic.version = 11 : i64} {
  func.func @_mlp_kernel(%arg0: i32, %arg1: memref<2x8x128xf32, #tpu.memory_space<vmem>>, %arg2: memref<32xf32, #tpu.memory_space<smem>>, %arg3: memref<16xf32, #tpu.memory_space<smem>>, %arg4: memref<128xf32, #tpu.memory_space<smem>>, %arg5: memref<8xf32, #tpu.memory_space<smem>>, %arg6: memref<8xf32, #tpu.memory_space<smem>>, %arg7: memref<1xf32, #tpu.memory_space<smem>>, %arg8: memref<8x128xf32, #tpu.memory_space<vmem>>) attributes {dimension_semantics = [#tpu.dimension_semantics<parallel>], iteration_bounds = array<i64: 1>, scalar_prefetch = 0 : i64, scratch_operands = 0 : i64, tpu.core_type = #tpu.core_type<tc>, window_params = [{transform_indices = @transform_0, window_bounds = array<i64: 2, 8, 128>}, {transform_indices = @transform_1, window_bounds = array<i64: 32>}, {transform_indices = @transform_2, window_bounds = array<i64: 16>}, {transform_indices = @transform_3, window_bounds = array<i64: 128>}, {transform_indices = @transform_4, window_bounds = array<i64: 8>}, {transform_indices = @transform_5, window_bounds = array<i64: 8>}, {transform_indices = @transform_6, window_bounds = array<i64: 1>}, {transform_indices = @transform_7, window_bounds = array<i64: 8, 128>}]} {
    %c0_i32 = arith.constant 0 : i32
    %c8_i32 = arith.constant 8 : i32
    %0 = arith.muli %c0_i32, %c8_i32 : i32
    %1 = tpu.assume_multiple %0, 8 : i32
    %c0 = arith.constant 0 : index
    %2 = arith.index_cast %1 : i32 to index
    %c0_0 = arith.constant 0 : index
    %3 = vector.load %arg1[%c0, %2, %c0_0] : memref<2x8x128xf32, #tpu.memory_space<vmem>>, vector<1x8x128xf32>
    %4 = vector.shape_cast %3 : vector<1x8x128xf32> to vector<8x128xf32>
    %c1 = arith.constant 1 : index
    %5 = arith.index_cast %1 : i32 to index
    %c0_1 = arith.constant 0 : index
    %6 = vector.load %arg1[%c1, %5, %c0_1] : memref<2x8x128xf32, #tpu.memory_space<vmem>>, vector<1x8x128xf32>
    %7 = vector.shape_cast %6 : vector<1x8x128xf32> to vector<8x128xf32>
    %c0_2 = arith.constant 0 : index
    %8 = memref.load %arg2[%c0_2] : memref<32xf32, #tpu.memory_space<smem>>
    %9 = vector.broadcast %8 : f32 to vector<8x128xf32>
    %10 = arith.mulf %9, %4 : vector<8x128xf32>
    %c1_3 = arith.constant 1 : index
    %11 = memref.load %arg2[%c1_3] : memref<32xf32, #tpu.memory_space<smem>>
    %12 = vector.broadcast %11 : f32 to vector<8x128xf32>
    %13 = arith.mulf %12, %7 : vector<8x128xf32>
    %14 = arith.addf %10, %13 : vector<8x128xf32>
    %c0_4 = arith.constant 0 : index
    %15 = memref.load %arg3[%c0_4] : memref<16xf32, #tpu.memory_space<smem>>
    %16 = vector.broadcast %15 : f32 to vector<8x128xf32>
    %17 = arith.addf %14, %16 : vector<8x128xf32>
    %cst = arith.constant 0.000000e+00 : f32
    %18 = vector.broadcast %cst : f32 to vector<8x128xf32>
    %19 = arith.maximumf %17, %18 : vector<8x128xf32>
    %c2 = arith.constant 2 : index
    %20 = memref.load %arg2[%c2] : memref<32xf32, #tpu.memory_space<smem>>
    %21 = vector.broadcast %20 : f32 to vector<8x128xf32>
    %22 = arith.mulf %21, %4 : vector<8x128xf32>
    %c3 = arith.constant 3 : index
    %23 = memref.load %arg2[%c3] : memref<32xf32, #tpu.memory_space<smem>>
    %24 = vector.broadcast %23 : f32 to vector<8x128xf32>
    %25 = arith.mulf %24, %7 : vector<8x128xf32>
    %26 = arith.addf %22, %25 : vector<8x128xf32>
    %c1_5 = arith.constant 1 : index
    %27 = memref.load %arg3[%c1_5] : memref<16xf32, #tpu.memory_space<smem>>
    %28 = vector.broadcast %27 : f32 to vector<8x128xf32>
    %29 = arith.addf %26, %28 : vector<8x128xf32>
    %cst_6 = arith.constant 0.000000e+00 : f32
    %30 = vector.broadcast %cst_6 : f32 to vector<8x128xf32>
    %31 = arith.maximumf %29, %30 : vector<8x128xf32>
    %c4 = arith.constant 4 : index
    %32 = memref.load %arg2[%c4] : memref<32xf32, #tpu.memory_space<smem>>
    %33 = vector.broadcast %32 : f32 to vector<8x128xf32>
    %34 = arith.mulf %33, %4 : vector<8x128xf32>
    %c5 = arith.constant 5 : index
    %35 = memref.load %arg2[%c5] : memref<32xf32, #tpu.memory_space<smem>>
    %36 = vector.broadcast %35 : f32 to vector<8x128xf32>
    %37 = arith.mulf %36, %7 : vector<8x128xf32>
    %38 = arith.addf %34, %37 : vector<8x128xf32>
    %c2_7 = arith.constant 2 : index
    %39 = memref.load %arg3[%c2_7] : memref<16xf32, #tpu.memory_space<smem>>
    %40 = vector.broadcast %39 : f32 to vector<8x128xf32>
    %41 = arith.addf %38, %40 : vector<8x128xf32>
    %cst_8 = arith.constant 0.000000e+00 : f32
    %42 = vector.broadcast %cst_8 : f32 to vector<8x128xf32>
    %43 = arith.maximumf %41, %42 : vector<8x128xf32>
    %c6 = arith.constant 6 : index
    %44 = memref.load %arg2[%c6] : memref<32xf32, #tpu.memory_space<smem>>
    %45 = vector.broadcast %44 : f32 to vector<8x128xf32>
    %46 = arith.mulf %45, %4 : vector<8x128xf32>
    %c7 = arith.constant 7 : index
    %47 = memref.load %arg2[%c7] : memref<32xf32, #tpu.memory_space<smem>>
    %48 = vector.broadcast %47 : f32 to vector<8x128xf32>
    %49 = arith.mulf %48, %7 : vector<8x128xf32>
    %50 = arith.addf %46, %49 : vector<8x128xf32>
    %c3_9 = arith.constant 3 : index
    %51 = memref.load %arg3[%c3_9] : memref<16xf32, #tpu.memory_space<smem>>
    %52 = vector.broadcast %51 : f32 to vector<8x128xf32>
    %53 = arith.addf %50, %52 : vector<8x128xf32>
    %cst_10 = arith.constant 0.000000e+00 : f32
    %54 = vector.broadcast %cst_10 : f32 to vector<8x128xf32>
    %55 = arith.maximumf %53, %54 : vector<8x128xf32>
    %c8 = arith.constant 8 : index
    %56 = memref.load %arg2[%c8] : memref<32xf32, #tpu.memory_space<smem>>
    %57 = vector.broadcast %56 : f32 to vector<8x128xf32>
    %58 = arith.mulf %57, %4 : vector<8x128xf32>
    %c9 = arith.constant 9 : index
    %59 = memref.load %arg2[%c9] : memref<32xf32, #tpu.memory_space<smem>>
    %60 = vector.broadcast %59 : f32 to vector<8x128xf32>
    %61 = arith.mulf %60, %7 : vector<8x128xf32>
    %62 = arith.addf %58, %61 : vector<8x128xf32>
    %c4_11 = arith.constant 4 : index
    %63 = memref.load %arg3[%c4_11] : memref<16xf32, #tpu.memory_space<smem>>
    %64 = vector.broadcast %63 : f32 to vector<8x128xf32>
    %65 = arith.addf %62, %64 : vector<8x128xf32>
    %cst_12 = arith.constant 0.000000e+00 : f32
    %66 = vector.broadcast %cst_12 : f32 to vector<8x128xf32>
    %67 = arith.maximumf %65, %66 : vector<8x128xf32>
    %c10 = arith.constant 10 : index
    %68 = memref.load %arg2[%c10] : memref<32xf32, #tpu.memory_space<smem>>
    %69 = vector.broadcast %68 : f32 to vector<8x128xf32>
    %70 = arith.mulf %69, %4 : vector<8x128xf32>
    %c11 = arith.constant 11 : index
    %71 = memref.load %arg2[%c11] : memref<32xf32, #tpu.memory_space<smem>>
    %72 = vector.broadcast %71 : f32 to vector<8x128xf32>
    %73 = arith.mulf %72, %7 : vector<8x128xf32>
    %74 = arith.addf %70, %73 : vector<8x128xf32>
    %c5_13 = arith.constant 5 : index
    %75 = memref.load %arg3[%c5_13] : memref<16xf32, #tpu.memory_space<smem>>
    %76 = vector.broadcast %75 : f32 to vector<8x128xf32>
    %77 = arith.addf %74, %76 : vector<8x128xf32>
    %cst_14 = arith.constant 0.000000e+00 : f32
    %78 = vector.broadcast %cst_14 : f32 to vector<8x128xf32>
    %79 = arith.maximumf %77, %78 : vector<8x128xf32>
    %c12 = arith.constant 12 : index
    %80 = memref.load %arg2[%c12] : memref<32xf32, #tpu.memory_space<smem>>
    %81 = vector.broadcast %80 : f32 to vector<8x128xf32>
    %82 = arith.mulf %81, %4 : vector<8x128xf32>
    %c13 = arith.constant 13 : index
    %83 = memref.load %arg2[%c13] : memref<32xf32, #tpu.memory_space<smem>>
    %84 = vector.broadcast %83 : f32 to vector<8x128xf32>
    %85 = arith.mulf %84, %7 : vector<8x128xf32>
    %86 = arith.addf %82, %85 : vector<8x128xf32>
    %c6_15 = arith.constant 6 : index
    %87 = memref.load %arg3[%c6_15] : memref<16xf32, #tpu.memory_space<smem>>
    %88 = vector.broadcast %87 : f32 to vector<8x128xf32>
    %89 = arith.addf %86, %88 : vector<8x128xf32>
    %cst_16 = arith.constant 0.000000e+00 : f32
    %90 = vector.broadcast %cst_16 : f32 to vector<8x128xf32>
    %91 = arith.maximumf %89, %90 : vector<8x128xf32>
    %c14 = arith.constant 14 : index
    %92 = memref.load %arg2[%c14] : memref<32xf32, #tpu.memory_space<smem>>
    %93 = vector.broadcast %92 : f32 to vector<8x128xf32>
    %94 = arith.mulf %93, %4 : vector<8x128xf32>
    %c15 = arith.constant 15 : index
    %95 = memref.load %arg2[%c15] : memref<32xf32, #tpu.memory_space<smem>>
    %96 = vector.broadcast %95 : f32 to vector<8x128xf32>
    %97 = arith.mulf %96, %7 : vector<8x128xf32>
    %98 = arith.addf %94, %97 : vector<8x128xf32>
    %c7_17 = arith.constant 7 : index
    %99 = memref.load %arg3[%c7_17] : memref<16xf32, #tpu.memory_space<smem>>
    %100 = vector.broadcast %99 : f32 to vector<8x128xf32>
    %101 = arith.addf %98, %100 : vector<8x128xf32>
    %cst_18 = arith.constant 0.000000e+00 : f32
    %102 = vector.broadcast %cst_18 : f32 to vector<8x128xf32>
    %103 = arith.maximumf %101, %102 : vector<8x128xf32>
    %c16 = arith.constant 16 : index
    %104 = memref.load %arg2[%c16] : memref<32xf32, #tpu.memory_space<smem>>
    %105 = vector.broadcast %104 : f32 to vector<8x128xf32>
    %106 = arith.mulf %105, %4 : vector<8x128xf32>
    %c17 = arith.constant 17 : index
    %107 = memref.load %arg2[%c17] : memref<32xf32, #tpu.memory_space<smem>>
    %108 = vector.broadcast %107 : f32 to vector<8x128xf32>
    %109 = arith.mulf %108, %7 : vector<8x128xf32>
    %110 = arith.addf %106, %109 : vector<8x128xf32>
    %c8_19 = arith.constant 8 : index
    %111 = memref.load %arg3[%c8_19] : memref<16xf32, #tpu.memory_space<smem>>
    %112 = vector.broadcast %111 : f32 to vector<8x128xf32>
    %113 = arith.addf %110, %112 : vector<8x128xf32>
    %cst_20 = arith.constant 0.000000e+00 : f32
    %114 = vector.broadcast %cst_20 : f32 to vector<8x128xf32>
    %115 = arith.maximumf %113, %114 : vector<8x128xf32>
    %c18 = arith.constant 18 : index
    %116 = memref.load %arg2[%c18] : memref<32xf32, #tpu.memory_space<smem>>
    %117 = vector.broadcast %116 : f32 to vector<8x128xf32>
    %118 = arith.mulf %117, %4 : vector<8x128xf32>
    %c19 = arith.constant 19 : index
    %119 = memref.load %arg2[%c19] : memref<32xf32, #tpu.memory_space<smem>>
    %120 = vector.broadcast %119 : f32 to vector<8x128xf32>
    %121 = arith.mulf %120, %7 : vector<8x128xf32>
    %122 = arith.addf %118, %121 : vector<8x128xf32>
    %c9_21 = arith.constant 9 : index
    %123 = memref.load %arg3[%c9_21] : memref<16xf32, #tpu.memory_space<smem>>
    %124 = vector.broadcast %123 : f32 to vector<8x128xf32>
    %125 = arith.addf %122, %124 : vector<8x128xf32>
    %cst_22 = arith.constant 0.000000e+00 : f32
    %126 = vector.broadcast %cst_22 : f32 to vector<8x128xf32>
    %127 = arith.maximumf %125, %126 : vector<8x128xf32>
    %c20 = arith.constant 20 : index
    %128 = memref.load %arg2[%c20] : memref<32xf32, #tpu.memory_space<smem>>
    %129 = vector.broadcast %128 : f32 to vector<8x128xf32>
    %130 = arith.mulf %129, %4 : vector<8x128xf32>
    %c21 = arith.constant 21 : index
    %131 = memref.load %arg2[%c21] : memref<32xf32, #tpu.memory_space<smem>>
    %132 = vector.broadcast %131 : f32 to vector<8x128xf32>
    %133 = arith.mulf %132, %7 : vector<8x128xf32>
    %134 = arith.addf %130, %133 : vector<8x128xf32>
    %c10_23 = arith.constant 10 : index
    %135 = memref.load %arg3[%c10_23] : memref<16xf32, #tpu.memory_space<smem>>
    %136 = vector.broadcast %135 : f32 to vector<8x128xf32>
    %137 = arith.addf %134, %136 : vector<8x128xf32>
    %cst_24 = arith.constant 0.000000e+00 : f32
    %138 = vector.broadcast %cst_24 : f32 to vector<8x128xf32>
    %139 = arith.maximumf %137, %138 : vector<8x128xf32>
    %c22 = arith.constant 22 : index
    %140 = memref.load %arg2[%c22] : memref<32xf32, #tpu.memory_space<smem>>
    %141 = vector.broadcast %140 : f32 to vector<8x128xf32>
    %142 = arith.mulf %141, %4 : vector<8x128xf32>
    %c23 = arith.constant 23 : index
    %143 = memref.load %arg2[%c23] : memref<32xf32, #tpu.memory_space<smem>>
    %144 = vector.broadcast %143 : f32 to vector<8x128xf32>
    %145 = arith.mulf %144, %7 : vector<8x128xf32>
    %146 = arith.addf %142, %145 : vector<8x128xf32>
    %c11_25 = arith.constant 11 : index
    %147 = memref.load %arg3[%c11_25] : memref<16xf32, #tpu.memory_space<smem>>
    %148 = vector.broadcast %147 : f32 to vector<8x128xf32>
    %149 = arith.addf %146, %148 : vector<8x128xf32>
    %cst_26 = arith.constant 0.000000e+00 : f32
    %150 = vector.broadcast %cst_26 : f32 to vector<8x128xf32>
    %151 = arith.maximumf %149, %150 : vector<8x128xf32>
    %c24 = arith.constant 24 : index
    %152 = memref.load %arg2[%c24] : memref<32xf32, #tpu.memory_space<smem>>
    %153 = vector.broadcast %152 : f32 to vector<8x128xf32>
    %154 = arith.mulf %153, %4 : vector<8x128xf32>
    %c25 = arith.constant 25 : index
    %155 = memref.load %arg2[%c25] : memref<32xf32, #tpu.memory_space<smem>>
    %156 = vector.broadcast %155 : f32 to vector<8x128xf32>
    %157 = arith.mulf %156, %7 : vector<8x128xf32>
    %158 = arith.addf %154, %157 : vector<8x128xf32>
    %c12_27 = arith.constant 12 : index
    %159 = memref.load %arg3[%c12_27] : memref<16xf32, #tpu.memory_space<smem>>
    %160 = vector.broadcast %159 : f32 to vector<8x128xf32>
    %161 = arith.addf %158, %160 : vector<8x128xf32>
    %cst_28 = arith.constant 0.000000e+00 : f32
    %162 = vector.broadcast %cst_28 : f32 to vector<8x128xf32>
    %163 = arith.maximumf %161, %162 : vector<8x128xf32>
    %c26 = arith.constant 26 : index
    %164 = memref.load %arg2[%c26] : memref<32xf32, #tpu.memory_space<smem>>
    %165 = vector.broadcast %164 : f32 to vector<8x128xf32>
    %166 = arith.mulf %165, %4 : vector<8x128xf32>
    %c27 = arith.constant 27 : index
    %167 = memref.load %arg2[%c27] : memref<32xf32, #tpu.memory_space<smem>>
    %168 = vector.broadcast %167 : f32 to vector<8x128xf32>
    %169 = arith.mulf %168, %7 : vector<8x128xf32>
    %170 = arith.addf %166, %169 : vector<8x128xf32>
    %c13_29 = arith.constant 13 : index
    %171 = memref.load %arg3[%c13_29] : memref<16xf32, #tpu.memory_space<smem>>
    %172 = vector.broadcast %171 : f32 to vector<8x128xf32>
    %173 = arith.addf %170, %172 : vector<8x128xf32>
    %cst_30 = arith.constant 0.000000e+00 : f32
    %174 = vector.broadcast %cst_30 : f32 to vector<8x128xf32>
    %175 = arith.maximumf %173, %174 : vector<8x128xf32>
    %c28 = arith.constant 28 : index
    %176 = memref.load %arg2[%c28] : memref<32xf32, #tpu.memory_space<smem>>
    %177 = vector.broadcast %176 : f32 to vector<8x128xf32>
    %178 = arith.mulf %177, %4 : vector<8x128xf32>
    %c29 = arith.constant 29 : index
    %179 = memref.load %arg2[%c29] : memref<32xf32, #tpu.memory_space<smem>>
    %180 = vector.broadcast %179 : f32 to vector<8x128xf32>
    %181 = arith.mulf %180, %7 : vector<8x128xf32>
    %182 = arith.addf %178, %181 : vector<8x128xf32>
    %c14_31 = arith.constant 14 : index
    %183 = memref.load %arg3[%c14_31] : memref<16xf32, #tpu.memory_space<smem>>
    %184 = vector.broadcast %183 : f32 to vector<8x128xf32>
    %185 = arith.addf %182, %184 : vector<8x128xf32>
    %cst_32 = arith.constant 0.000000e+00 : f32
    %186 = vector.broadcast %cst_32 : f32 to vector<8x128xf32>
    %187 = arith.maximumf %185, %186 : vector<8x128xf32>
    %c30 = arith.constant 30 : index
    %188 = memref.load %arg2[%c30] : memref<32xf32, #tpu.memory_space<smem>>
    %189 = vector.broadcast %188 : f32 to vector<8x128xf32>
    %190 = arith.mulf %189, %4 : vector<8x128xf32>
    %c31 = arith.constant 31 : index
    %191 = memref.load %arg2[%c31] : memref<32xf32, #tpu.memory_space<smem>>
    %192 = vector.broadcast %191 : f32 to vector<8x128xf32>
    %193 = arith.mulf %192, %7 : vector<8x128xf32>
    %194 = arith.addf %190, %193 : vector<8x128xf32>
    %c15_33 = arith.constant 15 : index
    %195 = memref.load %arg3[%c15_33] : memref<16xf32, #tpu.memory_space<smem>>
    %196 = vector.broadcast %195 : f32 to vector<8x128xf32>
    %197 = arith.addf %194, %196 : vector<8x128xf32>
    %cst_34 = arith.constant 0.000000e+00 : f32
    %198 = vector.broadcast %cst_34 : f32 to vector<8x128xf32>
    %199 = arith.maximumf %197, %198 : vector<8x128xf32>
    %c0_35 = arith.constant 0 : index
    %200 = memref.load %arg4[%c0_35] : memref<128xf32, #tpu.memory_space<smem>>
    %201 = vector.broadcast %200 : f32 to vector<8x128xf32>
    %202 = arith.mulf %201, %19 : vector<8x128xf32>
    %c1_36 = arith.constant 1 : index
    %203 = memref.load %arg4[%c1_36] : memref<128xf32, #tpu.memory_space<smem>>
    %204 = vector.broadcast %203 : f32 to vector<8x128xf32>
    %205 = arith.mulf %204, %31 : vector<8x128xf32>
    %206 = arith.addf %202, %205 : vector<8x128xf32>
    %c2_37 = arith.constant 2 : index
    %207 = memref.load %arg4[%c2_37] : memref<128xf32, #tpu.memory_space<smem>>
    %208 = vector.broadcast %207 : f32 to vector<8x128xf32>
    %209 = arith.mulf %208, %43 : vector<8x128xf32>
    %210 = arith.addf %206, %209 : vector<8x128xf32>
    %c3_38 = arith.constant 3 : index
    %211 = memref.load %arg4[%c3_38] : memref<128xf32, #tpu.memory_space<smem>>
    %212 = vector.broadcast %211 : f32 to vector<8x128xf32>
    %213 = arith.mulf %212, %55 : vector<8x128xf32>
    %214 = arith.addf %210, %213 : vector<8x128xf32>
    %c4_39 = arith.constant 4 : index
    %215 = memref.load %arg4[%c4_39] : memref<128xf32, #tpu.memory_space<smem>>
    %216 = vector.broadcast %215 : f32 to vector<8x128xf32>
    %217 = arith.mulf %216, %67 : vector<8x128xf32>
    %218 = arith.addf %214, %217 : vector<8x128xf32>
    %c5_40 = arith.constant 5 : index
    %219 = memref.load %arg4[%c5_40] : memref<128xf32, #tpu.memory_space<smem>>
    %220 = vector.broadcast %219 : f32 to vector<8x128xf32>
    %221 = arith.mulf %220, %79 : vector<8x128xf32>
    %222 = arith.addf %218, %221 : vector<8x128xf32>
    %c6_41 = arith.constant 6 : index
    %223 = memref.load %arg4[%c6_41] : memref<128xf32, #tpu.memory_space<smem>>
    %224 = vector.broadcast %223 : f32 to vector<8x128xf32>
    %225 = arith.mulf %224, %91 : vector<8x128xf32>
    %226 = arith.addf %222, %225 : vector<8x128xf32>
    %c7_42 = arith.constant 7 : index
    %227 = memref.load %arg4[%c7_42] : memref<128xf32, #tpu.memory_space<smem>>
    %228 = vector.broadcast %227 : f32 to vector<8x128xf32>
    %229 = arith.mulf %228, %103 : vector<8x128xf32>
    %230 = arith.addf %226, %229 : vector<8x128xf32>
    %c8_43 = arith.constant 8 : index
    %231 = memref.load %arg4[%c8_43] : memref<128xf32, #tpu.memory_space<smem>>
    %232 = vector.broadcast %231 : f32 to vector<8x128xf32>
    %233 = arith.mulf %232, %115 : vector<8x128xf32>
    %234 = arith.addf %230, %233 : vector<8x128xf32>
    %c9_44 = arith.constant 9 : index
    %235 = memref.load %arg4[%c9_44] : memref<128xf32, #tpu.memory_space<smem>>
    %236 = vector.broadcast %235 : f32 to vector<8x128xf32>
    %237 = arith.mulf %236, %127 : vector<8x128xf32>
    %238 = arith.addf %234, %237 : vector<8x128xf32>
    %c10_45 = arith.constant 10 : index
    %239 = memref.load %arg4[%c10_45] : memref<128xf32, #tpu.memory_space<smem>>
    %240 = vector.broadcast %239 : f32 to vector<8x128xf32>
    %241 = arith.mulf %240, %139 : vector<8x128xf32>
    %242 = arith.addf %238, %241 : vector<8x128xf32>
    %c11_46 = arith.constant 11 : index
    %243 = memref.load %arg4[%c11_46] : memref<128xf32, #tpu.memory_space<smem>>
    %244 = vector.broadcast %243 : f32 to vector<8x128xf32>
    %245 = arith.mulf %244, %151 : vector<8x128xf32>
    %246 = arith.addf %242, %245 : vector<8x128xf32>
    %c12_47 = arith.constant 12 : index
    %247 = memref.load %arg4[%c12_47] : memref<128xf32, #tpu.memory_space<smem>>
    %248 = vector.broadcast %247 : f32 to vector<8x128xf32>
    %249 = arith.mulf %248, %163 : vector<8x128xf32>
    %250 = arith.addf %246, %249 : vector<8x128xf32>
    %c13_48 = arith.constant 13 : index
    %251 = memref.load %arg4[%c13_48] : memref<128xf32, #tpu.memory_space<smem>>
    %252 = vector.broadcast %251 : f32 to vector<8x128xf32>
    %253 = arith.mulf %252, %175 : vector<8x128xf32>
    %254 = arith.addf %250, %253 : vector<8x128xf32>
    %c14_49 = arith.constant 14 : index
    %255 = memref.load %arg4[%c14_49] : memref<128xf32, #tpu.memory_space<smem>>
    %256 = vector.broadcast %255 : f32 to vector<8x128xf32>
    %257 = arith.mulf %256, %187 : vector<8x128xf32>
    %258 = arith.addf %254, %257 : vector<8x128xf32>
    %c15_50 = arith.constant 15 : index
    %259 = memref.load %arg4[%c15_50] : memref<128xf32, #tpu.memory_space<smem>>
    %260 = vector.broadcast %259 : f32 to vector<8x128xf32>
    %261 = arith.mulf %260, %199 : vector<8x128xf32>
    %262 = arith.addf %258, %261 : vector<8x128xf32>
    %c0_51 = arith.constant 0 : index
    %263 = memref.load %arg5[%c0_51] : memref<8xf32, #tpu.memory_space<smem>>
    %264 = vector.broadcast %263 : f32 to vector<8x128xf32>
    %265 = arith.addf %262, %264 : vector<8x128xf32>
    %cst_52 = arith.constant 0.000000e+00 : f32
    %266 = vector.broadcast %cst_52 : f32 to vector<8x128xf32>
    %267 = arith.maximumf %265, %266 : vector<8x128xf32>
    %c16_53 = arith.constant 16 : index
    %268 = memref.load %arg4[%c16_53] : memref<128xf32, #tpu.memory_space<smem>>
    %269 = vector.broadcast %268 : f32 to vector<8x128xf32>
    %270 = arith.mulf %269, %19 : vector<8x128xf32>
    %c17_54 = arith.constant 17 : index
    %271 = memref.load %arg4[%c17_54] : memref<128xf32, #tpu.memory_space<smem>>
    %272 = vector.broadcast %271 : f32 to vector<8x128xf32>
    %273 = arith.mulf %272, %31 : vector<8x128xf32>
    %274 = arith.addf %270, %273 : vector<8x128xf32>
    %c18_55 = arith.constant 18 : index
    %275 = memref.load %arg4[%c18_55] : memref<128xf32, #tpu.memory_space<smem>>
    %276 = vector.broadcast %275 : f32 to vector<8x128xf32>
    %277 = arith.mulf %276, %43 : vector<8x128xf32>
    %278 = arith.addf %274, %277 : vector<8x128xf32>
    %c19_56 = arith.constant 19 : index
    %279 = memref.load %arg4[%c19_56] : memref<128xf32, #tpu.memory_space<smem>>
    %280 = vector.broadcast %279 : f32 to vector<8x128xf32>
    %281 = arith.mulf %280, %55 : vector<8x128xf32>
    %282 = arith.addf %278, %281 : vector<8x128xf32>
    %c20_57 = arith.constant 20 : index
    %283 = memref.load %arg4[%c20_57] : memref<128xf32, #tpu.memory_space<smem>>
    %284 = vector.broadcast %283 : f32 to vector<8x128xf32>
    %285 = arith.mulf %284, %67 : vector<8x128xf32>
    %286 = arith.addf %282, %285 : vector<8x128xf32>
    %c21_58 = arith.constant 21 : index
    %287 = memref.load %arg4[%c21_58] : memref<128xf32, #tpu.memory_space<smem>>
    %288 = vector.broadcast %287 : f32 to vector<8x128xf32>
    %289 = arith.mulf %288, %79 : vector<8x128xf32>
    %290 = arith.addf %286, %289 : vector<8x128xf32>
    %c22_59 = arith.constant 22 : index
    %291 = memref.load %arg4[%c22_59] : memref<128xf32, #tpu.memory_space<smem>>
    %292 = vector.broadcast %291 : f32 to vector<8x128xf32>
    %293 = arith.mulf %292, %91 : vector<8x128xf32>
    %294 = arith.addf %290, %293 : vector<8x128xf32>
    %c23_60 = arith.constant 23 : index
    %295 = memref.load %arg4[%c23_60] : memref<128xf32, #tpu.memory_space<smem>>
    %296 = vector.broadcast %295 : f32 to vector<8x128xf32>
    %297 = arith.mulf %296, %103 : vector<8x128xf32>
    %298 = arith.addf %294, %297 : vector<8x128xf32>
    %c24_61 = arith.constant 24 : index
    %299 = memref.load %arg4[%c24_61] : memref<128xf32, #tpu.memory_space<smem>>
    %300 = vector.broadcast %299 : f32 to vector<8x128xf32>
    %301 = arith.mulf %300, %115 : vector<8x128xf32>
    %302 = arith.addf %298, %301 : vector<8x128xf32>
    %c25_62 = arith.constant 25 : index
    %303 = memref.load %arg4[%c25_62] : memref<128xf32, #tpu.memory_space<smem>>
    %304 = vector.broadcast %303 : f32 to vector<8x128xf32>
    %305 = arith.mulf %304, %127 : vector<8x128xf32>
    %306 = arith.addf %302, %305 : vector<8x128xf32>
    %c26_63 = arith.constant 26 : index
    %307 = memref.load %arg4[%c26_63] : memref<128xf32, #tpu.memory_space<smem>>
    %308 = vector.broadcast %307 : f32 to vector<8x128xf32>
    %309 = arith.mulf %308, %139 : vector<8x128xf32>
    %310 = arith.addf %306, %309 : vector<8x128xf32>
    %c27_64 = arith.constant 27 : index
    %311 = memref.load %arg4[%c27_64] : memref<128xf32, #tpu.memory_space<smem>>
    %312 = vector.broadcast %311 : f32 to vector<8x128xf32>
    %313 = arith.mulf %312, %151 : vector<8x128xf32>
    %314 = arith.addf %310, %313 : vector<8x128xf32>
    %c28_65 = arith.constant 28 : index
    %315 = memref.load %arg4[%c28_65] : memref<128xf32, #tpu.memory_space<smem>>
    %316 = vector.broadcast %315 : f32 to vector<8x128xf32>
    %317 = arith.mulf %316, %163 : vector<8x128xf32>
    %318 = arith.addf %314, %317 : vector<8x128xf32>
    %c29_66 = arith.constant 29 : index
    %319 = memref.load %arg4[%c29_66] : memref<128xf32, #tpu.memory_space<smem>>
    %320 = vector.broadcast %319 : f32 to vector<8x128xf32>
    %321 = arith.mulf %320, %175 : vector<8x128xf32>
    %322 = arith.addf %318, %321 : vector<8x128xf32>
    %c30_67 = arith.constant 30 : index
    %323 = memref.load %arg4[%c30_67] : memref<128xf32, #tpu.memory_space<smem>>
    %324 = vector.broadcast %323 : f32 to vector<8x128xf32>
    %325 = arith.mulf %324, %187 : vector<8x128xf32>
    %326 = arith.addf %322, %325 : vector<8x128xf32>
    %c31_68 = arith.constant 31 : index
    %327 = memref.load %arg4[%c31_68] : memref<128xf32, #tpu.memory_space<smem>>
    %328 = vector.broadcast %327 : f32 to vector<8x128xf32>
    %329 = arith.mulf %328, %199 : vector<8x128xf32>
    %330 = arith.addf %326, %329 : vector<8x128xf32>
    %c1_69 = arith.constant 1 : index
    %331 = memref.load %arg5[%c1_69] : memref<8xf32, #tpu.memory_space<smem>>
    %332 = vector.broadcast %331 : f32 to vector<8x128xf32>
    %333 = arith.addf %330, %332 : vector<8x128xf32>
    %cst_70 = arith.constant 0.000000e+00 : f32
    %334 = vector.broadcast %cst_70 : f32 to vector<8x128xf32>
    %335 = arith.maximumf %333, %334 : vector<8x128xf32>
    %c32 = arith.constant 32 : index
    %336 = memref.load %arg4[%c32] : memref<128xf32, #tpu.memory_space<smem>>
    %337 = vector.broadcast %336 : f32 to vector<8x128xf32>
    %338 = arith.mulf %337, %19 : vector<8x128xf32>
    %c33 = arith.constant 33 : index
    %339 = memref.load %arg4[%c33] : memref<128xf32, #tpu.memory_space<smem>>
    %340 = vector.broadcast %339 : f32 to vector<8x128xf32>
    %341 = arith.mulf %340, %31 : vector<8x128xf32>
    %342 = arith.addf %338, %341 : vector<8x128xf32>
    %c34 = arith.constant 34 : index
    %343 = memref.load %arg4[%c34] : memref<128xf32, #tpu.memory_space<smem>>
    %344 = vector.broadcast %343 : f32 to vector<8x128xf32>
    %345 = arith.mulf %344, %43 : vector<8x128xf32>
    %346 = arith.addf %342, %345 : vector<8x128xf32>
    %c35 = arith.constant 35 : index
    %347 = memref.load %arg4[%c35] : memref<128xf32, #tpu.memory_space<smem>>
    %348 = vector.broadcast %347 : f32 to vector<8x128xf32>
    %349 = arith.mulf %348, %55 : vector<8x128xf32>
    %350 = arith.addf %346, %349 : vector<8x128xf32>
    %c36 = arith.constant 36 : index
    %351 = memref.load %arg4[%c36] : memref<128xf32, #tpu.memory_space<smem>>
    %352 = vector.broadcast %351 : f32 to vector<8x128xf32>
    %353 = arith.mulf %352, %67 : vector<8x128xf32>
    %354 = arith.addf %350, %353 : vector<8x128xf32>
    %c37 = arith.constant 37 : index
    %355 = memref.load %arg4[%c37] : memref<128xf32, #tpu.memory_space<smem>>
    %356 = vector.broadcast %355 : f32 to vector<8x128xf32>
    %357 = arith.mulf %356, %79 : vector<8x128xf32>
    %358 = arith.addf %354, %357 : vector<8x128xf32>
    %c38 = arith.constant 38 : index
    %359 = memref.load %arg4[%c38] : memref<128xf32, #tpu.memory_space<smem>>
    %360 = vector.broadcast %359 : f32 to vector<8x128xf32>
    %361 = arith.mulf %360, %91 : vector<8x128xf32>
    %362 = arith.addf %358, %361 : vector<8x128xf32>
    %c39 = arith.constant 39 : index
    %363 = memref.load %arg4[%c39] : memref<128xf32, #tpu.memory_space<smem>>
    %364 = vector.broadcast %363 : f32 to vector<8x128xf32>
    %365 = arith.mulf %364, %103 : vector<8x128xf32>
    %366 = arith.addf %362, %365 : vector<8x128xf32>
    %c40 = arith.constant 40 : index
    %367 = memref.load %arg4[%c40] : memref<128xf32, #tpu.memory_space<smem>>
    %368 = vector.broadcast %367 : f32 to vector<8x128xf32>
    %369 = arith.mulf %368, %115 : vector<8x128xf32>
    %370 = arith.addf %366, %369 : vector<8x128xf32>
    %c41 = arith.constant 41 : index
    %371 = memref.load %arg4[%c41] : memref<128xf32, #tpu.memory_space<smem>>
    %372 = vector.broadcast %371 : f32 to vector<8x128xf32>
    %373 = arith.mulf %372, %127 : vector<8x128xf32>
    %374 = arith.addf %370, %373 : vector<8x128xf32>
    %c42 = arith.constant 42 : index
    %375 = memref.load %arg4[%c42] : memref<128xf32, #tpu.memory_space<smem>>
    %376 = vector.broadcast %375 : f32 to vector<8x128xf32>
    %377 = arith.mulf %376, %139 : vector<8x128xf32>
    %378 = arith.addf %374, %377 : vector<8x128xf32>
    %c43 = arith.constant 43 : index
    %379 = memref.load %arg4[%c43] : memref<128xf32, #tpu.memory_space<smem>>
    %380 = vector.broadcast %379 : f32 to vector<8x128xf32>
    %381 = arith.mulf %380, %151 : vector<8x128xf32>
    %382 = arith.addf %378, %381 : vector<8x128xf32>
    %c44 = arith.constant 44 : index
    %383 = memref.load %arg4[%c44] : memref<128xf32, #tpu.memory_space<smem>>
    %384 = vector.broadcast %383 : f32 to vector<8x128xf32>
    %385 = arith.mulf %384, %163 : vector<8x128xf32>
    %386 = arith.addf %382, %385 : vector<8x128xf32>
    %c45 = arith.constant 45 : index
    %387 = memref.load %arg4[%c45] : memref<128xf32, #tpu.memory_space<smem>>
    %388 = vector.broadcast %387 : f32 to vector<8x128xf32>
    %389 = arith.mulf %388, %175 : vector<8x128xf32>
    %390 = arith.addf %386, %389 : vector<8x128xf32>
    %c46 = arith.constant 46 : index
    %391 = memref.load %arg4[%c46] : memref<128xf32, #tpu.memory_space<smem>>
    %392 = vector.broadcast %391 : f32 to vector<8x128xf32>
    %393 = arith.mulf %392, %187 : vector<8x128xf32>
    %394 = arith.addf %390, %393 : vector<8x128xf32>
    %c47 = arith.constant 47 : index
    %395 = memref.load %arg4[%c47] : memref<128xf32, #tpu.memory_space<smem>>
    %396 = vector.broadcast %395 : f32 to vector<8x128xf32>
    %397 = arith.mulf %396, %199 : vector<8x128xf32>
    %398 = arith.addf %394, %397 : vector<8x128xf32>
    %c2_71 = arith.constant 2 : index
    %399 = memref.load %arg5[%c2_71] : memref<8xf32, #tpu.memory_space<smem>>
    %400 = vector.broadcast %399 : f32 to vector<8x128xf32>
    %401 = arith.addf %398, %400 : vector<8x128xf32>
    %cst_72 = arith.constant 0.000000e+00 : f32
    %402 = vector.broadcast %cst_72 : f32 to vector<8x128xf32>
    %403 = arith.maximumf %401, %402 : vector<8x128xf32>
    %c48 = arith.constant 48 : index
    %404 = memref.load %arg4[%c48] : memref<128xf32, #tpu.memory_space<smem>>
    %405 = vector.broadcast %404 : f32 to vector<8x128xf32>
    %406 = arith.mulf %405, %19 : vector<8x128xf32>
    %c49 = arith.constant 49 : index
    %407 = memref.load %arg4[%c49] : memref<128xf32, #tpu.memory_space<smem>>
    %408 = vector.broadcast %407 : f32 to vector<8x128xf32>
    %409 = arith.mulf %408, %31 : vector<8x128xf32>
    %410 = arith.addf %406, %409 : vector<8x128xf32>
    %c50 = arith.constant 50 : index
    %411 = memref.load %arg4[%c50] : memref<128xf32, #tpu.memory_space<smem>>
    %412 = vector.broadcast %411 : f32 to vector<8x128xf32>
    %413 = arith.mulf %412, %43 : vector<8x128xf32>
    %414 = arith.addf %410, %413 : vector<8x128xf32>
    %c51 = arith.constant 51 : index
    %415 = memref.load %arg4[%c51] : memref<128xf32, #tpu.memory_space<smem>>
    %416 = vector.broadcast %415 : f32 to vector<8x128xf32>
    %417 = arith.mulf %416, %55 : vector<8x128xf32>
    %418 = arith.addf %414, %417 : vector<8x128xf32>
    %c52 = arith.constant 52 : index
    %419 = memref.load %arg4[%c52] : memref<128xf32, #tpu.memory_space<smem>>
    %420 = vector.broadcast %419 : f32 to vector<8x128xf32>
    %421 = arith.mulf %420, %67 : vector<8x128xf32>
    %422 = arith.addf %418, %421 : vector<8x128xf32>
    %c53 = arith.constant 53 : index
    %423 = memref.load %arg4[%c53] : memref<128xf32, #tpu.memory_space<smem>>
    %424 = vector.broadcast %423 : f32 to vector<8x128xf32>
    %425 = arith.mulf %424, %79 : vector<8x128xf32>
    %426 = arith.addf %422, %425 : vector<8x128xf32>
    %c54 = arith.constant 54 : index
    %427 = memref.load %arg4[%c54] : memref<128xf32, #tpu.memory_space<smem>>
    %428 = vector.broadcast %427 : f32 to vector<8x128xf32>
    %429 = arith.mulf %428, %91 : vector<8x128xf32>
    %430 = arith.addf %426, %429 : vector<8x128xf32>
    %c55 = arith.constant 55 : index
    %431 = memref.load %arg4[%c55] : memref<128xf32, #tpu.memory_space<smem>>
    %432 = vector.broadcast %431 : f32 to vector<8x128xf32>
    %433 = arith.mulf %432, %103 : vector<8x128xf32>
    %434 = arith.addf %430, %433 : vector<8x128xf32>
    %c56 = arith.constant 56 : index
    %435 = memref.load %arg4[%c56] : memref<128xf32, #tpu.memory_space<smem>>
    %436 = vector.broadcast %435 : f32 to vector<8x128xf32>
    %437 = arith.mulf %436, %115 : vector<8x128xf32>
    %438 = arith.addf %434, %437 : vector<8x128xf32>
    %c57 = arith.constant 57 : index
    %439 = memref.load %arg4[%c57] : memref<128xf32, #tpu.memory_space<smem>>
    %440 = vector.broadcast %439 : f32 to vector<8x128xf32>
    %441 = arith.mulf %440, %127 : vector<8x128xf32>
    %442 = arith.addf %438, %441 : vector<8x128xf32>
    %c58 = arith.constant 58 : index
    %443 = memref.load %arg4[%c58] : memref<128xf32, #tpu.memory_space<smem>>
    %444 = vector.broadcast %443 : f32 to vector<8x128xf32>
    %445 = arith.mulf %444, %139 : vector<8x128xf32>
    %446 = arith.addf %442, %445 : vector<8x128xf32>
    %c59 = arith.constant 59 : index
    %447 = memref.load %arg4[%c59] : memref<128xf32, #tpu.memory_space<smem>>
    %448 = vector.broadcast %447 : f32 to vector<8x128xf32>
    %449 = arith.mulf %448, %151 : vector<8x128xf32>
    %450 = arith.addf %446, %449 : vector<8x128xf32>
    %c60 = arith.constant 60 : index
    %451 = memref.load %arg4[%c60] : memref<128xf32, #tpu.memory_space<smem>>
    %452 = vector.broadcast %451 : f32 to vector<8x128xf32>
    %453 = arith.mulf %452, %163 : vector<8x128xf32>
    %454 = arith.addf %450, %453 : vector<8x128xf32>
    %c61 = arith.constant 61 : index
    %455 = memref.load %arg4[%c61] : memref<128xf32, #tpu.memory_space<smem>>
    %456 = vector.broadcast %455 : f32 to vector<8x128xf32>
    %457 = arith.mulf %456, %175 : vector<8x128xf32>
    %458 = arith.addf %454, %457 : vector<8x128xf32>
    %c62 = arith.constant 62 : index
    %459 = memref.load %arg4[%c62] : memref<128xf32, #tpu.memory_space<smem>>
    %460 = vector.broadcast %459 : f32 to vector<8x128xf32>
    %461 = arith.mulf %460, %187 : vector<8x128xf32>
    %462 = arith.addf %458, %461 : vector<8x128xf32>
    %c63 = arith.constant 63 : index
    %463 = memref.load %arg4[%c63] : memref<128xf32, #tpu.memory_space<smem>>
    %464 = vector.broadcast %463 : f32 to vector<8x128xf32>
    %465 = arith.mulf %464, %199 : vector<8x128xf32>
    %466 = arith.addf %462, %465 : vector<8x128xf32>
    %c3_73 = arith.constant 3 : index
    %467 = memref.load %arg5[%c3_73] : memref<8xf32, #tpu.memory_space<smem>>
    %468 = vector.broadcast %467 : f32 to vector<8x128xf32>
    %469 = arith.addf %466, %468 : vector<8x128xf32>
    %cst_74 = arith.constant 0.000000e+00 : f32
    %470 = vector.broadcast %cst_74 : f32 to vector<8x128xf32>
    %471 = arith.maximumf %469, %470 : vector<8x128xf32>
    %c64 = arith.constant 64 : index
    %472 = memref.load %arg4[%c64] : memref<128xf32, #tpu.memory_space<smem>>
    %473 = vector.broadcast %472 : f32 to vector<8x128xf32>
    %474 = arith.mulf %473, %19 : vector<8x128xf32>
    %c65 = arith.constant 65 : index
    %475 = memref.load %arg4[%c65] : memref<128xf32, #tpu.memory_space<smem>>
    %476 = vector.broadcast %475 : f32 to vector<8x128xf32>
    %477 = arith.mulf %476, %31 : vector<8x128xf32>
    %478 = arith.addf %474, %477 : vector<8x128xf32>
    %c66 = arith.constant 66 : index
    %479 = memref.load %arg4[%c66] : memref<128xf32, #tpu.memory_space<smem>>
    %480 = vector.broadcast %479 : f32 to vector<8x128xf32>
    %481 = arith.mulf %480, %43 : vector<8x128xf32>
    %482 = arith.addf %478, %481 : vector<8x128xf32>
    %c67 = arith.constant 67 : index
    %483 = memref.load %arg4[%c67] : memref<128xf32, #tpu.memory_space<smem>>
    %484 = vector.broadcast %483 : f32 to vector<8x128xf32>
    %485 = arith.mulf %484, %55 : vector<8x128xf32>
    %486 = arith.addf %482, %485 : vector<8x128xf32>
    %c68 = arith.constant 68 : index
    %487 = memref.load %arg4[%c68] : memref<128xf32, #tpu.memory_space<smem>>
    %488 = vector.broadcast %487 : f32 to vector<8x128xf32>
    %489 = arith.mulf %488, %67 : vector<8x128xf32>
    %490 = arith.addf %486, %489 : vector<8x128xf32>
    %c69 = arith.constant 69 : index
    %491 = memref.load %arg4[%c69] : memref<128xf32, #tpu.memory_space<smem>>
    %492 = vector.broadcast %491 : f32 to vector<8x128xf32>
    %493 = arith.mulf %492, %79 : vector<8x128xf32>
    %494 = arith.addf %490, %493 : vector<8x128xf32>
    %c70 = arith.constant 70 : index
    %495 = memref.load %arg4[%c70] : memref<128xf32, #tpu.memory_space<smem>>
    %496 = vector.broadcast %495 : f32 to vector<8x128xf32>
    %497 = arith.mulf %496, %91 : vector<8x128xf32>
    %498 = arith.addf %494, %497 : vector<8x128xf32>
    %c71 = arith.constant 71 : index
    %499 = memref.load %arg4[%c71] : memref<128xf32, #tpu.memory_space<smem>>
    %500 = vector.broadcast %499 : f32 to vector<8x128xf32>
    %501 = arith.mulf %500, %103 : vector<8x128xf32>
    %502 = arith.addf %498, %501 : vector<8x128xf32>
    %c72 = arith.constant 72 : index
    %503 = memref.load %arg4[%c72] : memref<128xf32, #tpu.memory_space<smem>>
    %504 = vector.broadcast %503 : f32 to vector<8x128xf32>
    %505 = arith.mulf %504, %115 : vector<8x128xf32>
    %506 = arith.addf %502, %505 : vector<8x128xf32>
    %c73 = arith.constant 73 : index
    %507 = memref.load %arg4[%c73] : memref<128xf32, #tpu.memory_space<smem>>
    %508 = vector.broadcast %507 : f32 to vector<8x128xf32>
    %509 = arith.mulf %508, %127 : vector<8x128xf32>
    %510 = arith.addf %506, %509 : vector<8x128xf32>
    %c74 = arith.constant 74 : index
    %511 = memref.load %arg4[%c74] : memref<128xf32, #tpu.memory_space<smem>>
    %512 = vector.broadcast %511 : f32 to vector<8x128xf32>
    %513 = arith.mulf %512, %139 : vector<8x128xf32>
    %514 = arith.addf %510, %513 : vector<8x128xf32>
    %c75 = arith.constant 75 : index
    %515 = memref.load %arg4[%c75] : memref<128xf32, #tpu.memory_space<smem>>
    %516 = vector.broadcast %515 : f32 to vector<8x128xf32>
    %517 = arith.mulf %516, %151 : vector<8x128xf32>
    %518 = arith.addf %514, %517 : vector<8x128xf32>
    %c76 = arith.constant 76 : index
    %519 = memref.load %arg4[%c76] : memref<128xf32, #tpu.memory_space<smem>>
    %520 = vector.broadcast %519 : f32 to vector<8x128xf32>
    %521 = arith.mulf %520, %163 : vector<8x128xf32>
    %522 = arith.addf %518, %521 : vector<8x128xf32>
    %c77 = arith.constant 77 : index
    %523 = memref.load %arg4[%c77] : memref<128xf32, #tpu.memory_space<smem>>
    %524 = vector.broadcast %523 : f32 to vector<8x128xf32>
    %525 = arith.mulf %524, %175 : vector<8x128xf32>
    %526 = arith.addf %522, %525 : vector<8x128xf32>
    %c78 = arith.constant 78 : index
    %527 = memref.load %arg4[%c78] : memref<128xf32, #tpu.memory_space<smem>>
    %528 = vector.broadcast %527 : f32 to vector<8x128xf32>
    %529 = arith.mulf %528, %187 : vector<8x128xf32>
    %530 = arith.addf %526, %529 : vector<8x128xf32>
    %c79 = arith.constant 79 : index
    %531 = memref.load %arg4[%c79] : memref<128xf32, #tpu.memory_space<smem>>
    %532 = vector.broadcast %531 : f32 to vector<8x128xf32>
    %533 = arith.mulf %532, %199 : vector<8x128xf32>
    %534 = arith.addf %530, %533 : vector<8x128xf32>
    %c4_75 = arith.constant 4 : index
    %535 = memref.load %arg5[%c4_75] : memref<8xf32, #tpu.memory_space<smem>>
    %536 = vector.broadcast %535 : f32 to vector<8x128xf32>
    %537 = arith.addf %534, %536 : vector<8x128xf32>
    %cst_76 = arith.constant 0.000000e+00 : f32
    %538 = vector.broadcast %cst_76 : f32 to vector<8x128xf32>
    %539 = arith.maximumf %537, %538 : vector<8x128xf32>
    %c80 = arith.constant 80 : index
    %540 = memref.load %arg4[%c80] : memref<128xf32, #tpu.memory_space<smem>>
    %541 = vector.broadcast %540 : f32 to vector<8x128xf32>
    %542 = arith.mulf %541, %19 : vector<8x128xf32>
    %c81 = arith.constant 81 : index
    %543 = memref.load %arg4[%c81] : memref<128xf32, #tpu.memory_space<smem>>
    %544 = vector.broadcast %543 : f32 to vector<8x128xf32>
    %545 = arith.mulf %544, %31 : vector<8x128xf32>
    %546 = arith.addf %542, %545 : vector<8x128xf32>
    %c82 = arith.constant 82 : index
    %547 = memref.load %arg4[%c82] : memref<128xf32, #tpu.memory_space<smem>>
    %548 = vector.broadcast %547 : f32 to vector<8x128xf32>
    %549 = arith.mulf %548, %43 : vector<8x128xf32>
    %550 = arith.addf %546, %549 : vector<8x128xf32>
    %c83 = arith.constant 83 : index
    %551 = memref.load %arg4[%c83] : memref<128xf32, #tpu.memory_space<smem>>
    %552 = vector.broadcast %551 : f32 to vector<8x128xf32>
    %553 = arith.mulf %552, %55 : vector<8x128xf32>
    %554 = arith.addf %550, %553 : vector<8x128xf32>
    %c84 = arith.constant 84 : index
    %555 = memref.load %arg4[%c84] : memref<128xf32, #tpu.memory_space<smem>>
    %556 = vector.broadcast %555 : f32 to vector<8x128xf32>
    %557 = arith.mulf %556, %67 : vector<8x128xf32>
    %558 = arith.addf %554, %557 : vector<8x128xf32>
    %c85 = arith.constant 85 : index
    %559 = memref.load %arg4[%c85] : memref<128xf32, #tpu.memory_space<smem>>
    %560 = vector.broadcast %559 : f32 to vector<8x128xf32>
    %561 = arith.mulf %560, %79 : vector<8x128xf32>
    %562 = arith.addf %558, %561 : vector<8x128xf32>
    %c86 = arith.constant 86 : index
    %563 = memref.load %arg4[%c86] : memref<128xf32, #tpu.memory_space<smem>>
    %564 = vector.broadcast %563 : f32 to vector<8x128xf32>
    %565 = arith.mulf %564, %91 : vector<8x128xf32>
    %566 = arith.addf %562, %565 : vector<8x128xf32>
    %c87 = arith.constant 87 : index
    %567 = memref.load %arg4[%c87] : memref<128xf32, #tpu.memory_space<smem>>
    %568 = vector.broadcast %567 : f32 to vector<8x128xf32>
    %569 = arith.mulf %568, %103 : vector<8x128xf32>
    %570 = arith.addf %566, %569 : vector<8x128xf32>
    %c88 = arith.constant 88 : index
    %571 = memref.load %arg4[%c88] : memref<128xf32, #tpu.memory_space<smem>>
    %572 = vector.broadcast %571 : f32 to vector<8x128xf32>
    %573 = arith.mulf %572, %115 : vector<8x128xf32>
    %574 = arith.addf %570, %573 : vector<8x128xf32>
    %c89 = arith.constant 89 : index
    %575 = memref.load %arg4[%c89] : memref<128xf32, #tpu.memory_space<smem>>
    %576 = vector.broadcast %575 : f32 to vector<8x128xf32>
    %577 = arith.mulf %576, %127 : vector<8x128xf32>
    %578 = arith.addf %574, %577 : vector<8x128xf32>
    %c90 = arith.constant 90 : index
    %579 = memref.load %arg4[%c90] : memref<128xf32, #tpu.memory_space<smem>>
    %580 = vector.broadcast %579 : f32 to vector<8x128xf32>
    %581 = arith.mulf %580, %139 : vector<8x128xf32>
    %582 = arith.addf %578, %581 : vector<8x128xf32>
    %c91 = arith.constant 91 : index
    %583 = memref.load %arg4[%c91] : memref<128xf32, #tpu.memory_space<smem>>
    %584 = vector.broadcast %583 : f32 to vector<8x128xf32>
    %585 = arith.mulf %584, %151 : vector<8x128xf32>
    %586 = arith.addf %582, %585 : vector<8x128xf32>
    %c92 = arith.constant 92 : index
    %587 = memref.load %arg4[%c92] : memref<128xf32, #tpu.memory_space<smem>>
    %588 = vector.broadcast %587 : f32 to vector<8x128xf32>
    %589 = arith.mulf %588, %163 : vector<8x128xf32>
    %590 = arith.addf %586, %589 : vector<8x128xf32>
    %c93 = arith.constant 93 : index
    %591 = memref.load %arg4[%c93] : memref<128xf32, #tpu.memory_space<smem>>
    %592 = vector.broadcast %591 : f32 to vector<8x128xf32>
    %593 = arith.mulf %592, %175 : vector<8x128xf32>
    %594 = arith.addf %590, %593 : vector<8x128xf32>
    %c94 = arith.constant 94 : index
    %595 = memref.load %arg4[%c94] : memref<128xf32, #tpu.memory_space<smem>>
    %596 = vector.broadcast %595 : f32 to vector<8x128xf32>
    %597 = arith.mulf %596, %187 : vector<8x128xf32>
    %598 = arith.addf %594, %597 : vector<8x128xf32>
    %c95 = arith.constant 95 : index
    %599 = memref.load %arg4[%c95] : memref<128xf32, #tpu.memory_space<smem>>
    %600 = vector.broadcast %599 : f32 to vector<8x128xf32>
    %601 = arith.mulf %600, %199 : vector<8x128xf32>
    %602 = arith.addf %598, %601 : vector<8x128xf32>
    %c5_77 = arith.constant 5 : index
    %603 = memref.load %arg5[%c5_77] : memref<8xf32, #tpu.memory_space<smem>>
    %604 = vector.broadcast %603 : f32 to vector<8x128xf32>
    %605 = arith.addf %602, %604 : vector<8x128xf32>
    %cst_78 = arith.constant 0.000000e+00 : f32
    %606 = vector.broadcast %cst_78 : f32 to vector<8x128xf32>
    %607 = arith.maximumf %605, %606 : vector<8x128xf32>
    %c96 = arith.constant 96 : index
    %608 = memref.load %arg4[%c96] : memref<128xf32, #tpu.memory_space<smem>>
    %609 = vector.broadcast %608 : f32 to vector<8x128xf32>
    %610 = arith.mulf %609, %19 : vector<8x128xf32>
    %c97 = arith.constant 97 : index
    %611 = memref.load %arg4[%c97] : memref<128xf32, #tpu.memory_space<smem>>
    %612 = vector.broadcast %611 : f32 to vector<8x128xf32>
    %613 = arith.mulf %612, %31 : vector<8x128xf32>
    %614 = arith.addf %610, %613 : vector<8x128xf32>
    %c98 = arith.constant 98 : index
    %615 = memref.load %arg4[%c98] : memref<128xf32, #tpu.memory_space<smem>>
    %616 = vector.broadcast %615 : f32 to vector<8x128xf32>
    %617 = arith.mulf %616, %43 : vector<8x128xf32>
    %618 = arith.addf %614, %617 : vector<8x128xf32>
    %c99 = arith.constant 99 : index
    %619 = memref.load %arg4[%c99] : memref<128xf32, #tpu.memory_space<smem>>
    %620 = vector.broadcast %619 : f32 to vector<8x128xf32>
    %621 = arith.mulf %620, %55 : vector<8x128xf32>
    %622 = arith.addf %618, %621 : vector<8x128xf32>
    %c100 = arith.constant 100 : index
    %623 = memref.load %arg4[%c100] : memref<128xf32, #tpu.memory_space<smem>>
    %624 = vector.broadcast %623 : f32 to vector<8x128xf32>
    %625 = arith.mulf %624, %67 : vector<8x128xf32>
    %626 = arith.addf %622, %625 : vector<8x128xf32>
    %c101 = arith.constant 101 : index
    %627 = memref.load %arg4[%c101] : memref<128xf32, #tpu.memory_space<smem>>
    %628 = vector.broadcast %627 : f32 to vector<8x128xf32>
    %629 = arith.mulf %628, %79 : vector<8x128xf32>
    %630 = arith.addf %626, %629 : vector<8x128xf32>
    %c102 = arith.constant 102 : index
    %631 = memref.load %arg4[%c102] : memref<128xf32, #tpu.memory_space<smem>>
    %632 = vector.broadcast %631 : f32 to vector<8x128xf32>
    %633 = arith.mulf %632, %91 : vector<8x128xf32>
    %634 = arith.addf %630, %633 : vector<8x128xf32>
    %c103 = arith.constant 103 : index
    %635 = memref.load %arg4[%c103] : memref<128xf32, #tpu.memory_space<smem>>
    %636 = vector.broadcast %635 : f32 to vector<8x128xf32>
    %637 = arith.mulf %636, %103 : vector<8x128xf32>
    %638 = arith.addf %634, %637 : vector<8x128xf32>
    %c104 = arith.constant 104 : index
    %639 = memref.load %arg4[%c104] : memref<128xf32, #tpu.memory_space<smem>>
    %640 = vector.broadcast %639 : f32 to vector<8x128xf32>
    %641 = arith.mulf %640, %115 : vector<8x128xf32>
    %642 = arith.addf %638, %641 : vector<8x128xf32>
    %c105 = arith.constant 105 : index
    %643 = memref.load %arg4[%c105] : memref<128xf32, #tpu.memory_space<smem>>
    %644 = vector.broadcast %643 : f32 to vector<8x128xf32>
    %645 = arith.mulf %644, %127 : vector<8x128xf32>
    %646 = arith.addf %642, %645 : vector<8x128xf32>
    %c106 = arith.constant 106 : index
    %647 = memref.load %arg4[%c106] : memref<128xf32, #tpu.memory_space<smem>>
    %648 = vector.broadcast %647 : f32 to vector<8x128xf32>
    %649 = arith.mulf %648, %139 : vector<8x128xf32>
    %650 = arith.addf %646, %649 : vector<8x128xf32>
    %c107 = arith.constant 107 : index
    %651 = memref.load %arg4[%c107] : memref<128xf32, #tpu.memory_space<smem>>
    %652 = vector.broadcast %651 : f32 to vector<8x128xf32>
    %653 = arith.mulf %652, %151 : vector<8x128xf32>
    %654 = arith.addf %650, %653 : vector<8x128xf32>
    %c108 = arith.constant 108 : index
    %655 = memref.load %arg4[%c108] : memref<128xf32, #tpu.memory_space<smem>>
    %656 = vector.broadcast %655 : f32 to vector<8x128xf32>
    %657 = arith.mulf %656, %163 : vector<8x128xf32>
    %658 = arith.addf %654, %657 : vector<8x128xf32>
    %c109 = arith.constant 109 : index
    %659 = memref.load %arg4[%c109] : memref<128xf32, #tpu.memory_space<smem>>
    %660 = vector.broadcast %659 : f32 to vector<8x128xf32>
    %661 = arith.mulf %660, %175 : vector<8x128xf32>
    %662 = arith.addf %658, %661 : vector<8x128xf32>
    %c110 = arith.constant 110 : index
    %663 = memref.load %arg4[%c110] : memref<128xf32, #tpu.memory_space<smem>>
    %664 = vector.broadcast %663 : f32 to vector<8x128xf32>
    %665 = arith.mulf %664, %187 : vector<8x128xf32>
    %666 = arith.addf %662, %665 : vector<8x128xf32>
    %c111 = arith.constant 111 : index
    %667 = memref.load %arg4[%c111] : memref<128xf32, #tpu.memory_space<smem>>
    %668 = vector.broadcast %667 : f32 to vector<8x128xf32>
    %669 = arith.mulf %668, %199 : vector<8x128xf32>
    %670 = arith.addf %666, %669 : vector<8x128xf32>
    %c6_79 = arith.constant 6 : index
    %671 = memref.load %arg5[%c6_79] : memref<8xf32, #tpu.memory_space<smem>>
    %672 = vector.broadcast %671 : f32 to vector<8x128xf32>
    %673 = arith.addf %670, %672 : vector<8x128xf32>
    %cst_80 = arith.constant 0.000000e+00 : f32
    %674 = vector.broadcast %cst_80 : f32 to vector<8x128xf32>
    %675 = arith.maximumf %673, %674 : vector<8x128xf32>
    %c112 = arith.constant 112 : index
    %676 = memref.load %arg4[%c112] : memref<128xf32, #tpu.memory_space<smem>>
    %677 = vector.broadcast %676 : f32 to vector<8x128xf32>
    %678 = arith.mulf %677, %19 : vector<8x128xf32>
    %c113 = arith.constant 113 : index
    %679 = memref.load %arg4[%c113] : memref<128xf32, #tpu.memory_space<smem>>
    %680 = vector.broadcast %679 : f32 to vector<8x128xf32>
    %681 = arith.mulf %680, %31 : vector<8x128xf32>
    %682 = arith.addf %678, %681 : vector<8x128xf32>
    %c114 = arith.constant 114 : index
    %683 = memref.load %arg4[%c114] : memref<128xf32, #tpu.memory_space<smem>>
    %684 = vector.broadcast %683 : f32 to vector<8x128xf32>
    %685 = arith.mulf %684, %43 : vector<8x128xf32>
    %686 = arith.addf %682, %685 : vector<8x128xf32>
    %c115 = arith.constant 115 : index
    %687 = memref.load %arg4[%c115] : memref<128xf32, #tpu.memory_space<smem>>
    %688 = vector.broadcast %687 : f32 to vector<8x128xf32>
    %689 = arith.mulf %688, %55 : vector<8x128xf32>
    %690 = arith.addf %686, %689 : vector<8x128xf32>
    %c116 = arith.constant 116 : index
    %691 = memref.load %arg4[%c116] : memref<128xf32, #tpu.memory_space<smem>>
    %692 = vector.broadcast %691 : f32 to vector<8x128xf32>
    %693 = arith.mulf %692, %67 : vector<8x128xf32>
    %694 = arith.addf %690, %693 : vector<8x128xf32>
    %c117 = arith.constant 117 : index
    %695 = memref.load %arg4[%c117] : memref<128xf32, #tpu.memory_space<smem>>
    %696 = vector.broadcast %695 : f32 to vector<8x128xf32>
    %697 = arith.mulf %696, %79 : vector<8x128xf32>
    %698 = arith.addf %694, %697 : vector<8x128xf32>
    %c118 = arith.constant 118 : index
    %699 = memref.load %arg4[%c118] : memref<128xf32, #tpu.memory_space<smem>>
    %700 = vector.broadcast %699 : f32 to vector<8x128xf32>
    %701 = arith.mulf %700, %91 : vector<8x128xf32>
    %702 = arith.addf %698, %701 : vector<8x128xf32>
    %c119 = arith.constant 119 : index
    %703 = memref.load %arg4[%c119] : memref<128xf32, #tpu.memory_space<smem>>
    %704 = vector.broadcast %703 : f32 to vector<8x128xf32>
    %705 = arith.mulf %704, %103 : vector<8x128xf32>
    %706 = arith.addf %702, %705 : vector<8x128xf32>
    %c120 = arith.constant 120 : index
    %707 = memref.load %arg4[%c120] : memref<128xf32, #tpu.memory_space<smem>>
    %708 = vector.broadcast %707 : f32 to vector<8x128xf32>
    %709 = arith.mulf %708, %115 : vector<8x128xf32>
    %710 = arith.addf %706, %709 : vector<8x128xf32>
    %c121 = arith.constant 121 : index
    %711 = memref.load %arg4[%c121] : memref<128xf32, #tpu.memory_space<smem>>
    %712 = vector.broadcast %711 : f32 to vector<8x128xf32>
    %713 = arith.mulf %712, %127 : vector<8x128xf32>
    %714 = arith.addf %710, %713 : vector<8x128xf32>
    %c122 = arith.constant 122 : index
    %715 = memref.load %arg4[%c122] : memref<128xf32, #tpu.memory_space<smem>>
    %716 = vector.broadcast %715 : f32 to vector<8x128xf32>
    %717 = arith.mulf %716, %139 : vector<8x128xf32>
    %718 = arith.addf %714, %717 : vector<8x128xf32>
    %c123 = arith.constant 123 : index
    %719 = memref.load %arg4[%c123] : memref<128xf32, #tpu.memory_space<smem>>
    %720 = vector.broadcast %719 : f32 to vector<8x128xf32>
    %721 = arith.mulf %720, %151 : vector<8x128xf32>
    %722 = arith.addf %718, %721 : vector<8x128xf32>
    %c124 = arith.constant 124 : index
    %723 = memref.load %arg4[%c124] : memref<128xf32, #tpu.memory_space<smem>>
    %724 = vector.broadcast %723 : f32 to vector<8x128xf32>
    %725 = arith.mulf %724, %163 : vector<8x128xf32>
    %726 = arith.addf %722, %725 : vector<8x128xf32>
    %c125 = arith.constant 125 : index
    %727 = memref.load %arg4[%c125] : memref<128xf32, #tpu.memory_space<smem>>
    %728 = vector.broadcast %727 : f32 to vector<8x128xf32>
    %729 = arith.mulf %728, %175 : vector<8x128xf32>
    %730 = arith.addf %726, %729 : vector<8x128xf32>
    %c126 = arith.constant 126 : index
    %731 = memref.load %arg4[%c126] : memref<128xf32, #tpu.memory_space<smem>>
    %732 = vector.broadcast %731 : f32 to vector<8x128xf32>
    %733 = arith.mulf %732, %187 : vector<8x128xf32>
    %734 = arith.addf %730, %733 : vector<8x128xf32>
    %c127 = arith.constant 127 : index
    %735 = memref.load %arg4[%c127] : memref<128xf32, #tpu.memory_space<smem>>
    %736 = vector.broadcast %735 : f32 to vector<8x128xf32>
    %737 = arith.mulf %736, %199 : vector<8x128xf32>
    %738 = arith.addf %734, %737 : vector<8x128xf32>
    %c7_81 = arith.constant 7 : index
    %739 = memref.load %arg5[%c7_81] : memref<8xf32, #tpu.memory_space<smem>>
    %740 = vector.broadcast %739 : f32 to vector<8x128xf32>
    %741 = arith.addf %738, %740 : vector<8x128xf32>
    %cst_82 = arith.constant 0.000000e+00 : f32
    %742 = vector.broadcast %cst_82 : f32 to vector<8x128xf32>
    %743 = arith.maximumf %741, %742 : vector<8x128xf32>
    %c0_83 = arith.constant 0 : index
    %744 = memref.load %arg6[%c0_83] : memref<8xf32, #tpu.memory_space<smem>>
    %745 = vector.broadcast %744 : f32 to vector<8x128xf32>
    %746 = arith.mulf %745, %267 : vector<8x128xf32>
    %c1_84 = arith.constant 1 : index
    %747 = memref.load %arg6[%c1_84] : memref<8xf32, #tpu.memory_space<smem>>
    %748 = vector.broadcast %747 : f32 to vector<8x128xf32>
    %749 = arith.mulf %748, %335 : vector<8x128xf32>
    %750 = arith.addf %746, %749 : vector<8x128xf32>
    %c2_85 = arith.constant 2 : index
    %751 = memref.load %arg6[%c2_85] : memref<8xf32, #tpu.memory_space<smem>>
    %752 = vector.broadcast %751 : f32 to vector<8x128xf32>
    %753 = arith.mulf %752, %403 : vector<8x128xf32>
    %754 = arith.addf %750, %753 : vector<8x128xf32>
    %c3_86 = arith.constant 3 : index
    %755 = memref.load %arg6[%c3_86] : memref<8xf32, #tpu.memory_space<smem>>
    %756 = vector.broadcast %755 : f32 to vector<8x128xf32>
    %757 = arith.mulf %756, %471 : vector<8x128xf32>
    %758 = arith.addf %754, %757 : vector<8x128xf32>
    %c4_87 = arith.constant 4 : index
    %759 = memref.load %arg6[%c4_87] : memref<8xf32, #tpu.memory_space<smem>>
    %760 = vector.broadcast %759 : f32 to vector<8x128xf32>
    %761 = arith.mulf %760, %539 : vector<8x128xf32>
    %762 = arith.addf %758, %761 : vector<8x128xf32>
    %c5_88 = arith.constant 5 : index
    %763 = memref.load %arg6[%c5_88] : memref<8xf32, #tpu.memory_space<smem>>
    %764 = vector.broadcast %763 : f32 to vector<8x128xf32>
    %765 = arith.mulf %764, %607 : vector<8x128xf32>
    %766 = arith.addf %762, %765 : vector<8x128xf32>
    %c6_89 = arith.constant 6 : index
    %767 = memref.load %arg6[%c6_89] : memref<8xf32, #tpu.memory_space<smem>>
    %768 = vector.broadcast %767 : f32 to vector<8x128xf32>
    %769 = arith.mulf %768, %675 : vector<8x128xf32>
    %770 = arith.addf %766, %769 : vector<8x128xf32>
    %c7_90 = arith.constant 7 : index
    %771 = memref.load %arg6[%c7_90] : memref<8xf32, #tpu.memory_space<smem>>
    %772 = vector.broadcast %771 : f32 to vector<8x128xf32>
    %773 = arith.mulf %772, %743 : vector<8x128xf32>
    %774 = arith.addf %770, %773 : vector<8x128xf32>
    %c0_91 = arith.constant 0 : index
    %775 = memref.load %arg7[%c0_91] : memref<1xf32, #tpu.memory_space<smem>>
    %776 = vector.broadcast %775 : f32 to vector<8x128xf32>
    %777 = arith.addf %774, %776 : vector<8x128xf32>
    %778 = arith.index_cast %1 : i32 to index
    %c0_92 = arith.constant 0 : index
    %779 = vector.load %arg8[%778, %c0_92] : memref<8x128xf32, #tpu.memory_space<vmem>>, vector<8x128xf32>
    tpu.vector_store %arg8[%778, %c0_92], %777 {strides = array<i32>} : memref<8x128xf32, #tpu.memory_space<vmem>>, vector<8x128xf32>,
    %c1_i32 = arith.constant 1 : i32
    return
  }
  func.func @transform_0(%arg0: i32) -> (i32, i32, i32) {
    %c0_i32 = arith.constant 0 : i32
    %c0_i32_0 = arith.constant 0 : i32
    %c0_i32_1 = arith.constant 0 : i32
    return %c0_i32, %arg0, %c0_i32_0 : i32, i32, i32
  }
  func.func @transform_1(%arg0: i32) -> i32 {
    %c0_i32 = arith.constant 0 : i32
    %c0_i32_0 = arith.constant 0 : i32
    return %c0_i32 : i32
  }
  func.func @transform_2(%arg0: i32) -> i32 {
    %c0_i32 = arith.constant 0 : i32
    %c0_i32_0 = arith.constant 0 : i32
    return %c0_i32 : i32
  }
  func.func @transform_3(%arg0: i32) -> i32 {
    %c0_i32 = arith.constant 0 : i32
    %c0_i32_0 = arith.constant 0 : i32
    return %c0_i32 : i32
  }
  func.func @transform_4(%arg0: i32) -> i32 {
    %c0_i32 = arith.constant 0 : i32
    %c0_i32_0 = arith.constant 0 : i32
    return %c0_i32 : i32
  }
  func.func @transform_5(%arg0: i32) -> i32 {
    %c0_i32 = arith.constant 0 : i32
    %c0_i32_0 = arith.constant 0 : i32
    return %c0_i32 : i32
  }
  func.func @transform_6(%arg0: i32) -> i32 {
    %c0_i32 = arith.constant 0 : i32
    %c0_i32_0 = arith.constant 0 : i32
    return %c0_i32 : i32
  }
  func.func @transform_7(%arg0: i32) -> (i32, i32) {
    %c0_i32 = arith.constant 0 : i32
    %c0_i32_0 = arith.constant 0 : i32
    return %arg0, %c0_i32 : i32, i32
  }
}

</mosaic_0001>

<llo_original>
// kernel: energy_predictor_forward.1
$region0: #{energy_predictor_forward.1}
  #allocation0 [shape = 'u32[]', space=smem, size = 0x4, offset = 0x4, fixed_abs, tag = 'smem constant byte address 0x4 - core index']
  #allocation1 [shape = 'u32[144,128]{1,0:T(1,128)}', space=vmem, size = 0x12000, scoped, tag = 'internal scratch']
  #allocation2 [shape = 'f32[1]{0:T(128)S(6)}', space=smem, size = 0x200, scoped, tag = 'scoped memory for energy_predictor_forward.1']
  %s0 = inlined_call_operand.vmem [shape: f32[2,8,128], index: 0, kind: input, shape index: {}]
  %s1 = inlined_call_operand.vmem [shape: f32[32], index: 1, kind: input, shape index: {}]
  %s2 = inlined_call_operand.vmem [shape: f32[16], index: 2, kind: input, shape index: {}]
  %s3 = inlined_call_operand.vmem [shape: f32[128], index: 3, kind: input, shape index: {}]
  %s4 = inlined_call_operand.vmem [shape: f32[8], index: 4, kind: input, shape index: {}]
  %s5 = inlined_call_operand.vmem [shape: f32[8], index: 5, kind: input, shape index: {}]
  %s6 = inlined_call_operand.<no memory space> [shape: f32[1], index: 6, kind: input, shape index: {}]
  %s7 = inlined_call_operand.vmem [shape: f32[8,128], index: 7, kind: output, shape index: {}]
  %s8 = sld [smem:[#allocation0]]
  $region58: #{energy_predictor_forward.1} parent=0
    _
  %s10 = ssub.s32 1, %s8
  %s11 = scalar_select 0, %s10, %s8
  %12 = sst [smem:[#allocation2]] %s6
  $region1: #{energy_predictor_forward.1} parent=0
    #allocation3 [shape = 'u8[512]{0}', space=smem, size = 0x200, scoped, tag = 'input window, operand 1, single buffered']
    #allocation4 [shape = 's32[1]{0}', space=sflag, size = 0x4, scoped, tag = 'scoped memory for energy_predictor_forward.1']
    #allocation5 [shape = 'u8[512]{0}', space=smem, size = 0x200, scoped, tag = 'input window, operand 2, single buffered']
    #allocation6 [shape = 's32[1]{0}', space=sflag, size = 0x4, scoped, tag = 'scoped memory for energy_predictor_forward.1']
    #allocation7 [shape = 'u8[512]{0}', space=smem, size = 0x200, scoped, tag = 'input window, operand 3, single buffered']
    #allocation8 [shape = 'u8[512]{0}', space=smem, size = 0x200, scoped, tag = 'input window, operand 4, single buffered']
    #allocation9 [shape = 's32[1]{0}', space=sflag, size = 0x4, scoped, tag = 'scoped memory for energy_predictor_forward.1']
    #allocation10 [shape = 'u8[512]{0}', space=smem, size = 0x200, scoped, tag = 'input window, operand 5, single buffered']
    %13 = vsyncpa [#allocation4], 0
    %14 = vsyncpa [#allocation6], 0
    %15 = vsyncpa [#allocation9], 0
    // Predicated region
    $region2: #{energy_predictor_forward.1} parent=1 // pred_check
      _
    $region3: #{energy_predictor_forward.1} parent=1 // pred_check_branch
      %17 = sbr.rel (0) target = $region5
    $region4: #{energy_predictor_forward.1} parent=1 // pred_region
      _
    $region5: #{energy_predictor_forward.1} parent=1 // pred_fallthru
      _
    // Predicated region
    $region6: #{energy_predictor_forward.1} parent=1 // pred_check
      _
    $region7: #{energy_predictor_forward.1} parent=1 // pred_check_branch
      %19 = sbr.rel (0) target = $region9
    $region8: #{energy_predictor_forward.1} parent=1 // pred_region
      %s21 = ssub.s32 16, 16
      %22 = vsyncadd [#allocation4], %s21
      %s24 = sshll.u32 %s1, 4
      %s25 = int_to_ptr.vmem [resolvable:$true] %s24
      %27 = dma.vmem_to_smem %s25, 16, [#allocation3], [#allocation4]
    $region9: #{energy_predictor_forward.1} parent=1 // pred_fallthru
      _
    // Predicated region
    $region10: #{energy_predictor_forward.1} parent=1 // pred_check
      _
    $region11: #{energy_predictor_forward.1} parent=1 // pred_check_branch
      %29 = sbr.rel (0) target = $region13
    $region12: #{energy_predictor_forward.1} parent=1 // pred_region
      %s31 = ssub.s32 16, 16
      %32 = vsyncadd [#allocation6], %s31
      %s34 = sshll.u32 %s2, 4
      %s35 = int_to_ptr.vmem [resolvable:$true] %s34
      %37 = dma.vmem_to_smem %s35, 16, [#allocation5], [#allocation6]
    $region13: #{energy_predictor_forward.1} parent=1 // pred_fallthru
      _
    // Predicated region
    $region14: #{energy_predictor_forward.1} parent=1 // pred_check
      _
    $region15: #{energy_predictor_forward.1} parent=1 // pred_check_branch
      %39 = sbr.rel (0) target = $region17
    $region16: #{energy_predictor_forward.1} parent=1 // pred_region
      %s41 = ssub.s32 16, 16
      %42 = vsyncadd [#allocation6], %s41
      %s44 = sshll.u32 %s3, 4
      %s45 = int_to_ptr.vmem [resolvable:$true] %s44
      %47 = dma.vmem_to_smem %s45, 16, [#allocation7], [#allocation6]
    $region17: #{energy_predictor_forward.1} parent=1 // pred_fallthru
      _
    // Predicated region
    $region18: #{energy_predictor_forward.1} parent=1 // pred_check
      _
    $region19: #{energy_predictor_forward.1} parent=1 // pred_check_branch
      %49 = sbr.rel (0) target = $region21
    $region20: #{energy_predictor_forward.1} parent=1 // pred_region
      %s51 = ssub.s32 16, 16
      %52 = vsyncadd [#allocation9], %s51
      %s54 = sshll.u32 %s4, 4
      %s55 = int_to_ptr.vmem [resolvable:$true] %s54
      %57 = dma.vmem_to_smem %s55, 16, [#allocation8], [#allocation9]
    $region21: #{energy_predictor_forward.1} parent=1 // pred_fallthru
      _
    // Predicated region
    $region22: #{energy_predictor_forward.1} parent=1 // pred_check
      _
    $region23: #{energy_predictor_forward.1} parent=1 // pred_check_branch
      %59 = sbr.rel (0) target = $region25
    $region24: #{energy_predictor_forward.1} parent=1 // pred_region
      %s61 = ssub.s32 16, 16
      %62 = vsyncadd [#allocation9], %s61
      %s64 = sshll.u32 %s5, 4
      %s65 = int_to_ptr.vmem [resolvable:$true] %s64
      %67 = dma.vmem_to_smem %s65, 16, [#allocation10], [#allocation9]
    $region25: #{energy_predictor_forward.1} parent=1 // pred_fallthru
      _
    // Predicated region
    $region26: #{energy_predictor_forward.1} parent=1 // pred_check
      _
    $region27: #{energy_predictor_forward.1} parent=1 // pred_check_branch
      %69 = sbr.rel (0) target = $region29
    $region28: #{energy_predictor_forward.1} parent=1 // pred_region
      _
    $region29: #{energy_predictor_forward.1} parent=1 // pred_fallthru
      _
    // Predicated region
    $region30: #{energy_predictor_forward.1} parent=1 // pred_check
      _
    $region31: #{energy_predictor_forward.1} parent=1 // pred_check_branch
      %71 = sbr.rel (0) target = $region33
    $region32: #{energy_predictor_forward.1} parent=1 // pred_region
      %72 = dma.done [#allocation4], 16
    $region33: #{energy_predictor_forward.1} parent=1 // pred_fallthru
      _
    // Predicated region
    $region34: #{energy_predictor_forward.1} parent=1 // pred_check
      _
    $region35: #{energy_predictor_forward.1} parent=1 // pred_check_branch
      %74 = sbr.rel (0) target = $region37
    $region36: #{energy_predictor_forward.1} parent=1 // pred_region
      %75 = dma.done [#allocation6], 16
    $region37: #{energy_predictor_forward.1} parent=1 // pred_fallthru
      _
    // Predicated region
    $region38: #{energy_predictor_forward.1} parent=1 // pred_check
      _
    $region39: #{energy_predictor_forward.1} parent=1 // pred_check_branch
      %77 = sbr.rel (0) target = $region41
    $region40: #{energy_predictor_forward.1} parent=1 // pred_region
      %78 = dma.done [#allocation6], 16
    $region41: #{energy_predictor_forward.1} parent=1 // pred_fallthru
      _
    // Predicated region
    $region42: #{energy_predictor_forward.1} parent=1 // pred_check
      _
    $region43: #{energy_predictor_forward.1} parent=1 // pred_check_branch
      %80 = sbr.rel (0) target = $region45
    $region44: #{energy_predictor_forward.1} parent=1 // pred_region
      %81 = dma.done [#allocation9], 16
    $region45: #{energy_predictor_forward.1} parent=1 // pred_fallthru
      _
    // Predicated region
    $region46: #{energy_predictor_forward.1} parent=1 // pred_check
      _
    $region47: #{energy_predictor_forward.1} parent=1 // pred_check_branch
      %83 = sbr.rel (0) target = $region49
    $region48: #{energy_predictor_forward.1} parent=1 // pred_region
      %84 = dma.done [#allocation9], 16
    $region49: #{energy_predictor_forward.1} parent=1 // pred_fallthru
      _
    %85 = sfence
    %v86 = vld [vmem:[%s0] sm:$0xff]
    %s87 = sadd.s32 0, 8
    %s88 = scalar_lea.vmem %s0, %s87
    %v89 = vld [vmem:[%s88] sm:$0xff]
    %s90 = sld [smem:[#allocation3]]
    %v91 = vstv %s90
    %v92 = vmul.f32 %v91, %v86
    %s93 = sld [smem:[#allocation3 + $0x1]]
    %v94 = vstv %s93
    %v95 = vmul.f32 %v94, %v89
    %v96 = vadd.f32 %v92, %v95
    %s97 = sld [smem:[#allocation5]]
    %v98 = vstv %s97
    %v99 = vadd.f32 %v96, %v98
    %v100 = vmax.f32 %v99, 0.0
    %s101 = sld [smem:[#allocation3 + $0x2]]
    %v102 = vstv %s101
    %v103 = vmul.f32 %v102, %v86
    %s104 = sld [smem:[#allocation3 + $0x3]]
    %v105 = vstv %s104
    %v106 = vmul.f32 %v105, %v89
    %v107 = vadd.f32 %v103, %v106
    %s108 = sld [smem:[#allocation5 + $0x1]]
    %v109 = vstv %s108
    %v110 = vadd.f32 %v107, %v109
    %v111 = vmax.f32 %v110, 0.0
    %s112 = sld [smem:[#allocation3 + $0x4]]
    %v113 = vstv %s112
    %v114 = vmul.f32 %v113, %v86
    %s115 = sld [smem:[#allocation3 + $0x5]]
    %v116 = vstv %s115
    %v117 = vmul.f32 %v116, %v89
    %v118 = vadd.f32 %v114, %v117
    %s119 = sld [smem:[#allocation5 + $0x2]]
    %v120 = vstv %s119
    %v121 = vadd.f32 %v118, %v120
    %v122 = vmax.f32 %v121, 0.0
    %s123 = sld [smem:[#allocation3 + $0x6]]
    %v124 = vstv %s123
    %v125 = vmul.f32 %v124, %v86
    %s126 = sld [smem:[#allocation3 + $0x7]]
    %v127 = vstv %s126
    %v128 = vmul.f32 %v127, %v89
    %v129 = vadd.f32 %v125, %v128
    %s130 = sld [smem:[#allocation5 + $0x3]]
    %v131 = vstv %s130
    %v132 = vadd.f32 %v129, %v131
    %v133 = vmax.f32 %v132, 0.0
    %s134 = sld [smem:[#allocation3 + $0x8]]
    %v135 = vstv %s134
    %v136 = vmul.f32 %v135, %v86
    %s137 = sld [smem:[#allocation3 + $0x9]]
    %v138 = vstv %s137
    %v139 = vmul.f32 %v138, %v89
    %v140 = vadd.f32 %v136, %v139
    %s141 = sld [smem:[#allocation5 + $0x4]]
    %v142 = vstv %s141
    %v143 = vadd.f32 %v140, %v142
    %v144 = vmax.f32 %v143, 0.0
    %s145 = sld [smem:[#allocation3 + $0xa]]
    %v146 = vstv %s145
    %v147 = vmul.f32 %v146, %v86
    %s148 = sld [smem:[#allocation3 + $0xb]]
    %v149 = vstv %s148
    %v150 = vmul.f32 %v149, %v89
    %v151 = vadd.f32 %v147, %v150
    %s152 = sld [smem:[#allocation5 + $0x5]]
    %v153 = vstv %s152
    %v154 = vadd.f32 %v151, %v153
    %v155 = vmax.f32 %v154, 0.0
    %s156 = sld [smem:[#allocation3 + $0xc]]
    %v157 = vstv %s156
    %v158 = vmul.f32 %v157, %v86
    %s159 = sld [smem:[#allocation3 + $0xd]]
    %v160 = vstv %s159
    %v161 = vmul.f32 %v160, %v89
    %v162 = vadd.f32 %v158, %v161
    %s163 = sld [smem:[#allocation5 + $0x6]]
    %v164 = vstv %s163
    %v165 = vadd.f32 %v162, %v164
    %v166 = vmax.f32 %v165, 0.0
    %s167 = sld [smem:[#allocation3 + $0xe]]
    %v168 = vstv %s167
    %v169 = vmul.f32 %v168, %v86
    %s170 = sld [smem:[#allocation3 + $0xf]]
    %v171 = vstv %s170
    %v172 = vmul.f32 %v171, %v89
    %v173 = vadd.f32 %v169, %v172
    %s174 = sld [smem:[#allocation5 + $0x7]]
    %v175 = vstv %s174
    %v176 = vadd.f32 %v173, %v175
    %v177 = vmax.f32 %v176, 0.0
    %s178 = sld [smem:[#allocation3 + $0x10]]
    %v179 = vstv %s178
    %v180 = vmul.f32 %v179, %v86
    %s181 = sld [smem:[#allocation3 + $0x11]]
    %v182 = vstv %s181
    %v183 = vmul.f32 %v182, %v89
    %v184 = vadd.f32 %v180, %v183
    %s185 = sld [smem:[#allocation5 + $0x8]]
    %v186 = vstv %s185
    %v187 = vadd.f32 %v184, %v186
    %v188 = vmax.f32 %v187, 0.0
    %s189 = sld [smem:[#allocation3 + $0x12]]
    %v190 = vstv %s189
    %v191 = vmul.f32 %v190, %v86
    %s192 = sld [smem:[#allocation3 + $0x13]]
    %v193 = vstv %s192
    %v194 = vmul.f32 %v193, %v89
    %v195 = vadd.f32 %v191, %v194
    %s196 = sld [smem:[#allocation5 + $0x9]]
    %v197 = vstv %s196
    %v198 = vadd.f32 %v195, %v197
    %v199 = vmax.f32 %v198, 0.0
    %s200 = sld [smem:[#allocation3 + $0x14]]
    %v201 = vstv %s200
    %v202 = vmul.f32 %v201, %v86
    %s203 = sld [smem:[#allocation3 + $0x15]]
    %v204 = vstv %s203
    %v205 = vmul.f32 %v204, %v89
    %v206 = vadd.f32 %v202, %v205
    %s207 = sld [smem:[#allocation5 + $0xa]]
    %v208 = vstv %s207
    %v209 = vadd.f32 %v206, %v208
    %v210 = vmax.f32 %v209, 0.0
    %s211 = sld [smem:[#allocation3 + $0x16]]
    %v212 = vstv %s211
    %v213 = vmul.f32 %v212, %v86
    %s214 = sld [smem:[#allocation3 + $0x17]]
    %v215 = vstv %s214
    %v216 = vmul.f32 %v215, %v89
    %v217 = vadd.f32 %v213, %v216
    %s218 = sld [smem:[#allocation5 + $0xb]]
    %v219 = vstv %s218
    %v220 = vadd.f32 %v217, %v219
    %v221 = vmax.f32 %v220, 0.0
    %s222 = sld [smem:[#allocation3 + $0x18]]
    %v223 = vstv %s222
    %v224 = vmul.f32 %v223, %v86
    %s225 = sld [smem:[#allocation3 + $0x19]]
    %v226 = vstv %s225
    %v227 = vmul.f32 %v226, %v89
    %v228 = vadd.f32 %v224, %v227
    %s229 = sld [smem:[#allocation5 + $0xc]]
    %v230 = vstv %s229
    %v231 = vadd.f32 %v228, %v230
    %v232 = vmax.f32 %v231, 0.0
    %s233 = sld [smem:[#allocation3 + $0x1a]]
    %v234 = vstv %s233
    %v235 = vmul.f32 %v234, %v86
    %s236 = sld [smem:[#allocation3 + $0x1b]]
    %v237 = vstv %s236
    %v238 = vmul.f32 %v237, %v89
    %v239 = vadd.f32 %v235, %v238
    %s240 = sld [smem:[#allocation5 + $0xd]]
    %v241 = vstv %s240
    %v242 = vadd.f32 %v239, %v241
    %v243 = vmax.f32 %v242, 0.0
    %s244 = sld [smem:[#allocation3 + $0x1c]]
    %v245 = vstv %s244
    %v246 = vmul.f32 %v245, %v86
    %s247 = sld [smem:[#allocation3 + $0x1d]]
    %v248 = vstv %s247
    %v249 = vmul.f32 %v248, %v89
    %v250 = vadd.f32 %v246, %v249
    %s251 = sld [smem:[#allocation5 + $0xe]]
    %v252 = vstv %s251
    %v253 = vadd.f32 %v250, %v252
    %v254 = vmax.f32 %v253, 0.0
    %s255 = sld [smem:[#allocation3 + $0x1e]]
    %v256 = vstv %s255
    %v257 = vmul.f32 %v256, %v86
    %s258 = sld [smem:[#allocation3 + $0x1f]]
    %v259 = vstv %s258
    %v260 = vmul.f32 %v259, %v89
    %v261 = vadd.f32 %v257, %v260
    %s262 = sld [smem:[#allocation5 + $0xf]]
    %v263 = vstv %s262
    %v264 = vadd.f32 %v261, %v263
    %v265 = vmax.f32 %v264, 0.0
    %s266 = sld [smem:[#allocation7]]
    %v267 = vstv %s266
    %v268 = vmul.f32 %v267, %v100
    %s269 = sld [smem:[#allocation7 + $0x1]]
    %v270 = vstv %s269
    %v271 = vmul.f32 %v270, %v111
    %v272 = vadd.f32 %v268, %v271
    %s273 = sld [smem:[#allocation7 + $0x2]]
    %v274 = vstv %s273
    %v275 = vmul.f32 %v274, %v122
    %v276 = vadd.f32 %v272, %v275
    %s277 = sld [smem:[#allocation7 + $0x3]]
    %v278 = vstv %s277
    %v279 = vmul.f32 %v278, %v133
    %v280 = vadd.f32 %v276, %v279
    %s281 = sld [smem:[#allocation7 + $0x4]]
    %v282 = vstv %s281
    %v283 = vmul.f32 %v282, %v144
    %v284 = vadd.f32 %v280, %v283
    %s285 = sld [smem:[#allocation7 + $0x5]]
    %v286 = vstv %s285
    %v287 = vmul.f32 %v286, %v155
    %v288 = vadd.f32 %v284, %v287
    %s289 = sld [smem:[#allocation7 + $0x6]]
    %v290 = vstv %s289
    %v291 = vmul.f32 %v290, %v166
    %v292 = vadd.f32 %v288, %v291
    %s293 = sld [smem:[#allocation7 + $0x7]]
    %v294 = vstv %s293
    %v295 = vmul.f32 %v294, %v177
    %v296 = vadd.f32 %v292, %v295
    %s297 = sld [smem:[#allocation7 + $0x8]]
    %v298 = vstv %s297
    %v299 = vmul.f32 %v298, %v188
    %v300 = vadd.f32 %v296, %v299
    %s301 = sld [smem:[#allocation7 + $0x9]]
    %v302 = vstv %s301
    %v303 = vmul.f32 %v302, %v199
    %v304 = vadd.f32 %v300, %v303
    %s305 = sld [smem:[#allocation7 + $0xa]]
    %v306 = vstv %s305
    %v307 = vmul.f32 %v306, %v210
    %v308 = vadd.f32 %v304, %v307
    %s309 = sld [smem:[#allocation7 + $0xb]]
    %v310 = vstv %s309
    %v311 = vmul.f32 %v310, %v221
    %v312 = vadd.f32 %v308, %v311
    %s313 = sld [smem:[#allocation7 + $0xc]]
    %v314 = vstv %s313
    %v315 = vmul.f32 %v314, %v232
    %v316 = vadd.f32 %v312, %v315
    %s317 = sld [smem:[#allocation7 + $0xd]]
    %v318 = vstv %s317
    %v319 = vmul.f32 %v318, %v243
    %v320 = vadd.f32 %v316, %v319
    %s321 = sld [smem:[#allocation7 + $0xe]]
    %v322 = vstv %s321
    %v323 = vmul.f32 %v322, %v254
    %v324 = vadd.f32 %v320, %v323
    %s325 = sld [smem:[#allocation7 + $0xf]]
    %v326 = vstv %s325
    %v327 = vmul.f32 %v326, %v265
    %v328 = vadd.f32 %v324, %v327
    %s329 = sld [smem:[#allocation8]]
    %v330 = vstv %s329
    %v331 = vadd.f32 %v328, %v330
    %v332 = vmax.f32 %v331, 0.0
    %s333 = sld [smem:[#allocation7 + $0x10]]
    %v334 = vstv %s333
    %v335 = vmul.f32 %v334, %v100
    %s336 = sld [smem:[#allocation7 + $0x11]]
    %v337 = vstv %s336
    %v338 = vmul.f32 %v337, %v111
    %v339 = vadd.f32 %v335, %v338
    %s340 = sld [smem:[#allocation7 + $0x12]]
    %v341 = vstv %s340
    %v342 = vmul.f32 %v341, %v122
    %v343 = vadd.f32 %v339, %v342
    %s344 = sld [smem:[#allocation7 + $0x13]]
    %v345 = vstv %s344
    %v346 = vmul.f32 %v345, %v133
    %v347 = vadd.f32 %v343, %v346
    %s348 = sld [smem:[#allocation7 + $0x14]]
    %v349 = vstv %s348
    %v350 = vmul.f32 %v349, %v144
    %v351 = vadd.f32 %v347, %v350
    %s352 = sld [smem:[#allocation7 + $0x15]]
    %v353 = vstv %s352
    %v354 = vmul.f32 %v353, %v155
    %v355 = vadd.f32 %v351, %v354
    %s356 = sld [smem:[#allocation7 + $0x16]]
    %v357 = vstv %s356
    %v358 = vmul.f32 %v357, %v166
    %v359 = vadd.f32 %v355, %v358
    %s360 = sld [smem:[#allocation7 + $0x17]]
    %v361 = vstv %s360
    %v362 = vmul.f32 %v361, %v177
    %v363 = vadd.f32 %v359, %v362
    %s364 = sld [smem:[#allocation7 + $0x18]]
    %v365 = vstv %s364
    %v366 = vmul.f32 %v365, %v188
    %v367 = vadd.f32 %v363, %v366
    %s368 = sld [smem:[#allocation7 + $0x19]]
    %v369 = vstv %s368
    %v370 = vmul.f32 %v369, %v199
    %v371 = vadd.f32 %v367, %v370
    %s372 = sld [smem:[#allocation7 + $0x1a]]
    %v373 = vstv %s372
    %v374 = vmul.f32 %v373, %v210
    %v375 = vadd.f32 %v371, %v374
    %s376 = sld [smem:[#allocation7 + $0x1b]]
    %v377 = vstv %s376
    %v378 = vmul.f32 %v377, %v221
    %v379 = vadd.f32 %v375, %v378
    %s380 = sld [smem:[#allocation7 + $0x1c]]
    %v381 = vstv %s380
    %v382 = vmul.f32 %v381, %v232
    %v383 = vadd.f32 %v379, %v382
    %s384 = sld [smem:[#allocation7 + $0x1d]]
    %v385 = vstv %s384
    %v386 = vmul.f32 %v385, %v243
    %v387 = vadd.f32 %v383, %v386
    %s388 = sld [smem:[#allocation7 + $0x1e]]
    %v389 = vstv %s388
    %v390 = vmul.f32 %v389, %v254
    %v391 = vadd.f32 %v387, %v390
    %s392 = sld [smem:[#allocation7 + $0x1f]]
    %v393 = vstv %s392
    %v394 = vmul.f32 %v393, %v265
    %v395 = vadd.f32 %v391, %v394
    %s396 = sld [smem:[#allocation8 + $0x1]]
    %v397 = vstv %s396
    %v398 = vadd.f32 %v395, %v397
    %v399 = vmax.f32 %v398, 0.0
    %s400 = sld [smem:[#allocation7 + $0x20]]
    %v401 = vstv %s400
    %v402 = vmul.f32 %v401, %v100
    %s403 = sld [smem:[#allocation7 + $0x21]]
    %v404 = vstv %s403
    %v405 = vmul.f32 %v404, %v111
    %v406 = vadd.f32 %v402, %v405
    %s407 = sld [smem:[#allocation7 + $0x22]]
    %v408 = vstv %s407
    %v409 = vmul.f32 %v408, %v122
    %v410 = vadd.f32 %v406, %v409
    %s411 = sld [smem:[#allocation7 + $0x23]]
    %v412 = vstv %s411
    %v413 = vmul.f32 %v412, %v133
    %v414 = vadd.f32 %v410, %v413
    %s415 = sld [smem:[#allocation7 + $0x24]]
    %v416 = vstv %s415
    %v417 = vmul.f32 %v416, %v144
    %v418 = vadd.f32 %v414, %v417
    %s419 = sld [smem:[#allocation7 + $0x25]]
    %v420 = vstv %s419
    %v421 = vmul.f32 %v420, %v155
    %v422 = vadd.f32 %v418, %v421
    %s423 = sld [smem:[#allocation7 + $0x26]]
    %v424 = vstv %s423
    %v425 = vmul.f32 %v424, %v166
    %v426 = vadd.f32 %v422, %v425
    %s427 = sld [smem:[#allocation7 + $0x27]]
    %v428 = vstv %s427
    %v429 = vmul.f32 %v428, %v177
    %v430 = vadd.f32 %v426, %v429
    %s431 = sld [smem:[#allocation7 + $0x28]]
    %v432 = vstv %s431
    %v433 = vmul.f32 %v432, %v188
    %v434 = vadd.f32 %v430, %v433
    %s435 = sld [smem:[#allocation7 + $0x29]]
    %v436 = vstv %s435
    %v437 = vmul.f32 %v436, %v199
    %v438 = vadd.f32 %v434, %v437
    %s439 = sld [smem:[#allocation7 + $0x2a]]
    %v440 = vstv %s439
    %v441 = vmul.f32 %v440, %v210
    %v442 = vadd.f32 %v438, %v441
    %s443 = sld [smem:[#allocation7 + $0x2b]]
    %v444 = vstv %s443
    %v445 = vmul.f32 %v444, %v221
    %v446 = vadd.f32 %v442, %v445
    %s447 = sld [smem:[#allocation7 + $0x2c]]
    %v448 = vstv %s447
    %v449 = vmul.f32 %v448, %v232
    %v450 = vadd.f32 %v446, %v449
    %s451 = sld [smem:[#allocation7 + $0x2d]]
    %v452 = vstv %s451
    %v453 = vmul.f32 %v452, %v243
    %v454 = vadd.f32 %v450, %v453
    %s455 = sld [smem:[#allocation7 + $0x2e]]
    %v456 = vstv %s455
    %v457 = vmul.f32 %v456, %v254
    %v458 = vadd.f32 %v454, %v457
    %s459 = sld [smem:[#allocation7 + $0x2f]]
    %v460 = vstv %s459
    %v461 = vmul.f32 %v460, %v265
    %v462 = vadd.f32 %v458, %v461
    %s463 = sld [smem:[#allocation8 + $0x2]]
    %v464 = vstv %s463
    %v465 = vadd.f32 %v462, %v464
    %v466 = vmax.f32 %v465, 0.0
    %s467 = sld [smem:[#allocation7 + $0x30]]
    %v468 = vstv %s467
    %v469 = vmul.f32 %v468, %v100
    %s470 = sld [smem:[#allocation7 + $0x31]]
    %v471 = vstv %s470
    %v472 = vmul.f32 %v471, %v111
    %v473 = vadd.f32 %v469, %v472
    %s474 = sld [smem:[#allocation7 + $0x32]]
    %v475 = vstv %s474
    %v476 = vmul.f32 %v475, %v122
    %v477 = vadd.f32 %v473, %v476
    %s478 = sld [smem:[#allocation7 + $0x33]]
    %v479 = vstv %s478
    %v480 = vmul.f32 %v479, %v133
    %v481 = vadd.f32 %v477, %v480
    %s482 = sld [smem:[#allocation7 + $0x34]]
    %v483 = vstv %s482
    %v484 = vmul.f32 %v483, %v144
    %v485 = vadd.f32 %v481, %v484
    %s486 = sld [smem:[#allocation7 + $0x35]]
    %v487 = vstv %s486
    %v488 = vmul.f32 %v487, %v155
    %v489 = vadd.f32 %v485, %v488
    %s490 = sld [smem:[#allocation7 + $0x36]]
    %v491 = vstv %s490
    %v492 = vmul.f32 %v491, %v166
    %v493 = vadd.f32 %v489, %v492
    %s494 = sld [smem:[#allocation7 + $0x37]]
    %v495 = vstv %s494
    %v496 = vmul.f32 %v495, %v177
    %v497 = vadd.f32 %v493, %v496
    %s498 = sld [smem:[#allocation7 + $0x38]]
    %v499 = vstv %s498
    %v500 = vmul.f32 %v499, %v188
    %v501 = vadd.f32 %v497, %v500
    %s502 = sld [smem:[#allocation7 + $0x39]]
    %v503 = vstv %s502
    %v504 = vmul.f32 %v503, %v199
    %v505 = vadd.f32 %v501, %v504
    %s506 = sld [smem:[#allocation7 + $0x3a]]
    %v507 = vstv %s506
    %v508 = vmul.f32 %v507, %v210
    %v509 = vadd.f32 %v505, %v508
    %s510 = sld [smem:[#allocation7 + $0x3b]]
    %v511 = vstv %s510
    %v512 = vmul.f32 %v511, %v221
    %v513 = vadd.f32 %v509, %v512
    %s514 = sld [smem:[#allocation7 + $0x3c]]
    %v515 = vstv %s514
    %v516 = vmul.f32 %v515, %v232
    %v517 = vadd.f32 %v513, %v516
    %s518 = sld [smem:[#allocation7 + $0x3d]]
    %v519 = vstv %s518
    %v520 = vmul.f32 %v519, %v243
    %v521 = vadd.f32 %v517, %v520
    %s522 = sld [smem:[#allocation7 + $0x3e]]
    %v523 = vstv %s522
    %v524 = vmul.f32 %v523, %v254
    %v525 = vadd.f32 %v521, %v524
    %s526 = sld [smem:[#allocation7 + $0x3f]]
    %v527 = vstv %s526
    %v528 = vmul.f32 %v527, %v265
    %v529 = vadd.f32 %v525, %v528
    %s530 = sld [smem:[#allocation8 + $0x3]]
    %v531 = vstv %s530
    %v532 = vadd.f32 %v529, %v531
    %v533 = vmax.f32 %v532, 0.0
    %s534 = sld [smem:[#allocation7 + $0x40]]
    %v535 = vstv %s534
    %v536 = vmul.f32 %v535, %v100
    %s537 = sld [smem:[#allocation7 + $0x41]]
    %v538 = vstv %s537
    %v539 = vmul.f32 %v538, %v111
    %v540 = vadd.f32 %v536, %v539
    %s541 = sld [smem:[#allocation7 + $0x42]]
    %v542 = vstv %s541
    %v543 = vmul.f32 %v542, %v122
    %v544 = vadd.f32 %v540, %v543
    %s545 = sld [smem:[#allocation7 + $0x43]]
    %v546 = vstv %s545
    %v547 = vmul.f32 %v546, %v133
    %v548 = vadd.f32 %v544, %v547
    %s549 = sld [smem:[#allocation7 + $0x44]]
    %v550 = vstv %s549
    %v551 = vmul.f32 %v550, %v144
    %v552 = vadd.f32 %v548, %v551
    %s553 = sld [smem:[#allocation7 + $0x45]]
    %v554 = vstv %s553
    %v555 = vmul.f32 %v554, %v155
    %v556 = vadd.f32 %v552, %v555
    %s557 = sld [smem:[#allocation7 + $0x46]]
    %v558 = vstv %s557
    %v559 = vmul.f32 %v558, %v166
    %v560 = vadd.f32 %v556, %v559
    %s561 = sld [smem:[#allocation7 + $0x47]]
    %v562 = vstv %s561
    %v563 = vmul.f32 %v562, %v177
    %v564 = vadd.f32 %v560, %v563
    %s565 = sld [smem:[#allocation7 + $0x48]]
    %v566 = vstv %s565
    %v567 = vmul.f32 %v566, %v188
    %v568 = vadd.f32 %v564, %v567
    %s569 = sld [smem:[#allocation7 + $0x49]]
    %v570 = vstv %s569
    %v571 = vmul.f32 %v570, %v199
    %v572 = vadd.f32 %v568, %v571
    %s573 = sld [smem:[#allocation7 + $0x4a]]
    %v574 = vstv %s573
    %v575 = vmul.f32 %v574, %v210
    %v576 = vadd.f32 %v572, %v575
    %s577 = sld [smem:[#allocation7 + $0x4b]]
    %v578 = vstv %s577
    %v579 = vmul.f32 %v578, %v221
    %v580 = vadd.f32 %v576, %v579
    %s581 = sld [smem:[#allocation7 + $0x4c]]
    %v582 = vstv %s581
    %v583 = vmul.f32 %v582, %v232
    %v584 = vadd.f32 %v580, %v583
    %s585 = sld [smem:[#allocation7 + $0x4d]]
    %v586 = vstv %s585
    %v587 = vmul.f32 %v586, %v243
    %v588 = vadd.f32 %v584, %v587
    %s589 = sld [smem:[#allocation7 + $0x4e]]
    %v590 = vstv %s589
    %v591 = vmul.f32 %v590, %v254
    %v592 = vadd.f32 %v588, %v591
    %s593 = sld [smem:[#allocation7 + $0x4f]]
    %v594 = vstv %s593
    %v595 = vmul.f32 %v594, %v265
    %v596 = vadd.f32 %v592, %v595
    %s597 = sld [smem:[#allocation8 + $0x4]]
    %v598 = vstv %s597
    %v599 = vadd.f32 %v596, %v598
    %v600 = vmax.f32 %v599, 0.0
    %s601 = sld [smem:[#allocation7 + $0x50]]
    %v602 = vstv %s601
    %v603 = vmul.f32 %v602, %v100
    %s604 = sld [smem:[#allocation7 + $0x51]]
    %v605 = vstv %s604
    %v606 = vmul.f32 %v605, %v111
    %v607 = vadd.f32 %v603, %v606
    %s608 = sld [smem:[#allocation7 + $0x52]]
    %v609 = vstv %s608
    %v610 = vmul.f32 %v609, %v122
    %v611 = vadd.f32 %v607, %v610
    %s612 = sld [smem:[#allocation7 + $0x53]]
    %v613 = vstv %s612
    %v614 = vmul.f32 %v613, %v133
    %v615 = vadd.f32 %v611, %v614
    %s616 = sld [smem:[#allocation7 + $0x54]]
    %v617 = vstv %s616
    %v618 = vmul.f32 %v617, %v144
    %v619 = vadd.f32 %v615, %v618
    %s620 = sld [smem:[#allocation7 + $0x55]]
    %v621 = vstv %s620
    %v622 = vmul.f32 %v621, %v155
    %v623 = vadd.f32 %v619, %v622
    %s624 = sld [smem:[#allocation7 + $0x56]]
    %v625 = vstv %s624
    %v626 = vmul.f32 %v625, %v166
    %v627 = vadd.f32 %v623, %v626
    %s628 = sld [smem:[#allocation7 + $0x57]]
    %v629 = vstv %s628
    %v630 = vmul.f32 %v629, %v177
    %v631 = vadd.f32 %v627, %v630
    %s632 = sld [smem:[#allocation7 + $0x58]]
    %v633 = vstv %s632
    %v634 = vmul.f32 %v633, %v188
    %v635 = vadd.f32 %v631, %v634
    %s636 = sld [smem:[#allocation7 + $0x59]]
    %v637 = vstv %s636
    %v638 = vmul.f32 %v637, %v199
    %v639 = vadd.f32 %v635, %v638
    %s640 = sld [smem:[#allocation7 + $0x5a]]
    %v641 = vstv %s640
    %v642 = vmul.f32 %v641, %v210
    %v643 = vadd.f32 %v639, %v642
    %s644 = sld [smem:[#allocation7 + $0x5b]]
    %v645 = vstv %s644
    %v646 = vmul.f32 %v645, %v221
    %v647 = vadd.f32 %v643, %v646
    %s648 = sld [smem:[#allocation7 + $0x5c]]
    %v649 = vstv %s648
    %v650 = vmul.f32 %v649, %v232
    %v651 = vadd.f32 %v647, %v650
    %s652 = sld [smem:[#allocation7 + $0x5d]]
    %v653 = vstv %s652
    %v654 = vmul.f32 %v653, %v243
    %v655 = vadd.f32 %v651, %v654
    %s656 = sld [smem:[#allocation7 + $0x5e]]
    %v657 = vstv %s656
    %v658 = vmul.f32 %v657, %v254
    %v659 = vadd.f32 %v655, %v658
    %s660 = sld [smem:[#allocation7 + $0x5f]]
    %v661 = vstv %s660
    %v662 = vmul.f32 %v661, %v265
    %v663 = vadd.f32 %v659, %v662
    %s664 = sld [smem:[#allocation8 + $0x5]]
    %v665 = vstv %s664
    %v666 = vadd.f32 %v663, %v665
    %v667 = vmax.f32 %v666, 0.0
    %s668 = sld [smem:[#allocation7 + $0x60]]
    %v669 = vstv %s668
    %v670 = vmul.f32 %v669, %v100
    %s671 = sld [smem:[#allocation7 + $0x61]]
    %v672 = vstv %s671
    %v673 = vmul.f32 %v672, %v111
    %v674 = vadd.f32 %v670, %v673
    %s675 = sld [smem:[#allocation7 + $0x62]]
    %v676 = vstv %s675
    %v677 = vmul.f32 %v676, %v122
    %v678 = vadd.f32 %v674, %v677
    %s679 = sld [smem:[#allocation7 + $0x63]]
    %v680 = vstv %s679
    %v681 = vmul.f32 %v680, %v133
    %v682 = vadd.f32 %v678, %v681
    %s683 = sld [smem:[#allocation7 + $0x64]]
    %v684 = vstv %s683
    %v685 = vmul.f32 %v684, %v144
    %v686 = vadd.f32 %v682, %v685
    %s687 = sld [smem:[#allocation7 + $0x65]]
    %v688 = vstv %s687
    %v689 = vmul.f32 %v688, %v155
    %v690 = vadd.f32 %v686, %v689
    %s691 = sld [smem:[#allocation7 + $0x66]]
    %v692 = vstv %s691
    %v693 = vmul.f32 %v692, %v166
    %v694 = vadd.f32 %v690, %v693
    %s695 = sld [smem:[#allocation7 + $0x67]]
    %v696 = vstv %s695
    %v697 = vmul.f32 %v696, %v177
    %v698 = vadd.f32 %v694, %v697
    %s699 = sld [smem:[#allocation7 + $0x68]]
    %v700 = vstv %s699
    %v701 = vmul.f32 %v700, %v188
    %v702 = vadd.f32 %v698, %v701
    %s703 = sld [smem:[#allocation7 + $0x69]]
    %v704 = vstv %s703
    %v705 = vmul.f32 %v704, %v199
    %v706 = vadd.f32 %v702, %v705
    %s707 = sld [smem:[#allocation7 + $0x6a]]
    %v708 = vstv %s707
    %v709 = vmul.f32 %v708, %v210
    %v710 = vadd.f32 %v706, %v709
    %s711 = sld [smem:[#allocation7 + $0x6b]]
    %v712 = vstv %s711
    %v713 = vmul.f32 %v712, %v221
    %v714 = vadd.f32 %v710, %v713
    %s715 = sld [smem:[#allocation7 + $0x6c]]
    %v716 = vstv %s715
    %v717 = vmul.f32 %v716, %v232
    %v718 = vadd.f32 %v714, %v717
    %s719 = sld [smem:[#allocation7 + $0x6d]]
    %v720 = vstv %s719
    %v721 = vmul.f32 %v720, %v243
    %v722 = vadd.f32 %v718, %v721
    %s723 = sld [smem:[#allocation7 + $0x6e]]
    %v724 = vstv %s723
    %v725 = vmul.f32 %v724, %v254
    %v726 = vadd.f32 %v722, %v725
    %s727 = sld [smem:[#allocation7 + $0x6f]]
    %v728 = vstv %s727
    %v729 = vmul.f32 %v728, %v265
    %v730 = vadd.f32 %v726, %v729
    %s731 = sld [smem:[#allocation8 + $0x6]]
    %v732 = vstv %s731
    %v733 = vadd.f32 %v730, %v732
    %v734 = vmax.f32 %v733, 0.0
    %s735 = sld [smem:[#allocation7 + $0x70]]
    %v736 = vstv %s735
    %v737 = vmul.f32 %v736, %v100
    %s738 = sld [smem:[#allocation7 + $0x71]]
    %v739 = vstv %s738
    %v740 = vmul.f32 %v739, %v111
    %v741 = vadd.f32 %v737, %v740
    %s742 = sld [smem:[#allocation7 + $0x72]]
    %v743 = vstv %s742
    %v744 = vmul.f32 %v743, %v122
    %v745 = vadd.f32 %v741, %v744
    %s746 = sld [smem:[#allocation7 + $0x73]]
    %v747 = vstv %s746
    %v748 = vmul.f32 %v747, %v133
    %v749 = vadd.f32 %v745, %v748
    %s750 = sld [smem:[#allocation7 + $0x74]]
    %v751 = vstv %s750
    %v752 = vmul.f32 %v751, %v144
    %v753 = vadd.f32 %v749, %v752
    %s754 = sld [smem:[#allocation7 + $0x75]]
    %v755 = vstv %s754
    %v756 = vmul.f32 %v755, %v155
    %v757 = vadd.f32 %v753, %v756
    %s758 = sld [smem:[#allocation7 + $0x76]]
    %v759 = vstv %s758
    %v760 = vmul.f32 %v759, %v166
    %v761 = vadd.f32 %v757, %v760
    %s762 = sld [smem:[#allocation7 + $0x77]]
    %v763 = vstv %s762
    %v764 = vmul.f32 %v763, %v177
    %v765 = vadd.f32 %v761, %v764
    %s766 = sld [smem:[#allocation7 + $0x78]]
    %v767 = vstv %s766
    %v768 = vmul.f32 %v767, %v188
    %v769 = vadd.f32 %v765, %v768
    %s770 = sld [smem:[#allocation7 + $0x79]]
    %v771 = vstv %s770
    %v772 = vmul.f32 %v771, %v199
    %v773 = vadd.f32 %v769, %v772
    %s774 = sld [smem:[#allocation7 + $0x7a]]
    %v775 = vstv %s774
    %v776 = vmul.f32 %v775, %v210
    %v777 = vadd.f32 %v773, %v776
    %s778 = sld [smem:[#allocation7 + $0x7b]]
    %v779 = vstv %s778
    %v780 = vmul.f32 %v779, %v221
    %v781 = vadd.f32 %v777, %v780
    %s782 = sld [smem:[#allocation7 + $0x7c]]
    %v783 = vstv %s782
    %v784 = vmul.f32 %v783, %v232
    %v785 = vadd.f32 %v781, %v784
    %s786 = sld [smem:[#allocation7 + $0x7d]]
    %v787 = vstv %s786
    %v788 = vmul.f32 %v787, %v243
    %v789 = vadd.f32 %v785, %v788
    %s790 = sld [smem:[#allocation7 + $0x7e]]
    %v791 = vstv %s790
    %v792 = vmul.f32 %v791, %v254
    %v793 = vadd.f32 %v789, %v792
    %s794 = sld [smem:[#allocation7 + $0x7f]]
    %v795 = vstv %s794
    %v796 = vmul.f32 %v795, %v265
    %v797 = vadd.f32 %v793, %v796
    %s798 = sld [smem:[#allocation8 + $0x7]]
    %v799 = vstv %s798
    %v800 = vadd.f32 %v797, %v799
    %v801 = vmax.f32 %v800, 0.0
    %s802 = sld [smem:[#allocation10]]
    %v803 = vstv %s802
    %v804 = vmul.f32 %v803, %v332
    %s805 = sld [smem:[#allocation10 + $0x1]]
    %v806 = vstv %s805
    %v807 = vmul.f32 %v806, %v399
    %v808 = vadd.f32 %v804, %v807
    %s809 = sld [smem:[#allocation10 + $0x2]]
    %v810 = vstv %s809
    %v811 = vmul.f32 %v810, %v466
    %v812 = vadd.f32 %v808, %v811
    %s813 = sld [smem:[#allocation10 + $0x3]]
    %v814 = vstv %s813
    %v815 = vmul.f32 %v814, %v533
    %v816 = vadd.f32 %v812, %v815
    %s817 = sld [smem:[#allocation10 + $0x4]]
    %v818 = vstv %s817
    %v819 = vmul.f32 %v818, %v600
    %v820 = vadd.f32 %v816, %v819
    %s821 = sld [smem:[#allocation10 + $0x5]]
    %v822 = vstv %s821
    %v823 = vmul.f32 %v822, %v667
    %v824 = vadd.f32 %v820, %v823
    %s825 = sld [smem:[#allocation10 + $0x6]]
    %v826 = vstv %s825
    %v827 = vmul.f32 %v826, %v734
    %v828 = vadd.f32 %v824, %v827
    %s829 = sld [smem:[#allocation10 + $0x7]]
    %v830 = vstv %s829
    %v831 = vmul.f32 %v830, %v801
    %v832 = vadd.f32 %v828, %v831
    %s833 = sld [smem:[#allocation2]]
    %v834 = vstv %s833
    %v835 = vadd.f32 %v832, %v834
    %836 = vst [vmem:[%s7] sm:$0xff] %v835
    // Predicated region
    $region50: #{energy_predictor_forward.1} parent=1 // pred_check
      _
    $region51: #{energy_predictor_forward.1} parent=1 // pred_check_branch
      %838 = sbr.rel (0) target = $region53
    $region52: #{energy_predictor_forward.1} parent=1 // pred_region
      _
    $region53: #{energy_predictor_forward.1} parent=1 // pred_fallthru
      _
    // Predicated region
    $region54: #{energy_predictor_forward.1} parent=1 // pred_check
      _
    $region55: #{energy_predictor_forward.1} parent=1 // pred_check_branch
      %840 = sbr.rel (0) target = $region57
    $region56: #{energy_predictor_forward.1} parent=1 // pred_region
      _
    $region57: #{energy_predictor_forward.1} parent=1 // pred_fallthru
      _
    %841 = vsyncpa [#allocation4], 1
    %842 = vsyncpa [#allocation6], 1
    %843 = vsyncpa [#allocation9], 1

</llo_original>
